<compile_context>
chip_gen: v5e
topology: v5e:2x2
jax: 0.10.0
libtpu: 0.0.40
codegen_flags: <defaults>
</compile_context>

<pallas_src>
import jax
import jax.numpy as jnp
from jax.experimental import pallas as pl
from jax.experimental.pallas import tpu as pltpu


def _pick_row_tile(R, W, Cout, dtype_bytes=4, target_bytes=2 << 20):
    """Largest row tile (divisor of R) whose p2 output block is <= ~2 MiB,
    preferring >= 2 grid steps, keeping the matmul block sublane-aligned."""
    per_row = 64 * W * Cout * dtype_bytes          # p2 block bytes per p5 row
    cap = max(1, target_bytes // per_row)

    def ok(d):
        return R % d == 0 and ((d * W) % 8 == 0 or d == R)

    cands = [d for d in range(1, R + 1) if ok(d) and d <= cap]
    pref = [d for d in cands if R // d >= 2]
    if pref:
        return max(pref)
    if cands:
        return max(cands)
    return R


def _fused_upsampling_kernel(x_ref, w_ref, b_ref, p5_ref, p4_ref, p3_ref, p2_ref):
    # x_ref : (th*W, Cin)   w_ref : (Cin, Cout)   b_ref : (1, Cout)
    # p5_ref: (th*W, Cout)
    # pK_ref: (th, k, W, k*Cout) for k = 2, 4, 8
    Cout = w_ref.shape[1]
    th = p4_ref.shape[0]
    W = p4_ref.shape[2]

    # 1x1 conv == per-pixel matmul on the MXU.
    acc = jnp.dot(x_ref[...], w_ref[...], preferred_element_type=jnp.float32)
    p5_flat = (acc + b_ref[...]).astype(p5_ref.dtype)          # (th*W, Cout)
    p5_ref[...] = p5_flat

    # Split pixel rows into (row, W). W is a multiple of 8 for this module's
    # shapes, so this is a tile-aligned (free) re-view of whole (8, 128) tiles.
    p5_row = p5_flat.reshape(th, W, Cout)[:, None]             # (th, 1, W, Cout)

    # Nearest-neighbour kx upsampling: every (row-dup a, col-dup b) position of
    # the output block gets the same p5 tile, stored densely at a 256-aligned
    # lane offset (unmasked stores, minimal register pressure).
    def scatter(o_ref, k):
        for a in range(k):
            for b_i in range(k):
                o_ref[:, a:a + 1, :, b_i * Cout:(b_i + 1) * Cout] = p5_row

    scatter(p4_ref, 2)
    scatter(p3_ref, 4)
    scatter(p2_ref, 8)


def upsampling_forward(x_nchw, w, b):
    """x_nchw: (N, 512, H, W); w: (Cin, Cout); b: (Cout,).
    Returns [p2, p3, p4, p5] in NCHW, matching the PyTorch module."""
    N, Cin, H, W = x_nchw.shape
    Cout = w.shape[1]
    R = N * H
    M = R * W
    dtype = x_nchw.dtype
    itemsize = jnp.dtype(dtype).itemsize

    x_nhwc = jnp.transpose(x_nchw, (0, 2, 3, 1))               # (N, H, W, Cin)
    x2d = x_nhwc.reshape(M, Cin)
    b2d = b.reshape(1, Cout)

    th = _pick_row_tile(R, W, Cout, dtype_bytes=itemsize)
    grid = (R // th,)

    out_shape = (
        jax.ShapeDtypeStruct((M, Cout), dtype),                 # p5 (flat pixels)
        jax.ShapeDtypeStruct((R, 2, W, 2 * Cout), dtype),       # p4
        jax.ShapeDtypeStruct((R, 4, W, 4 * Cout), dtype),       # p3
        jax.ShapeDtypeStruct((R, 8, W, 8 * Cout), dtype),       # p2
    )
    in_specs = [
        pl.BlockSpec((th * W, Cin), lambda i: (i, 0)),
        pl.BlockSpec((Cin, Cout), lambda i: (0, 0)),
        pl.BlockSpec((1, Cout), lambda i: (0, 0)),
    ]
    out_specs = [
        pl.BlockSpec((th * W, Cout), lambda i: (i, 0)),
        pl.BlockSpec((th, 2, W, 2 * Cout), lambda i: (i, 0, 0, 0)),
        pl.BlockSpec((th, 4, W, 4 * Cout), lambda i: (i, 0, 0, 0)),
        pl.BlockSpec((th, 8, W, 8 * Cout), lambda i: (i, 0, 0, 0)),
    ]

    # Double-buffered block footprint + headroom; stays well under every
    # generation's scoped-VMEM budget at the chosen tile size.
    block_elems = (th * W * Cin + Cin * Cout + Cout
                   + th * W * Cout * (1 + 4 + 16 + 64))
    vmem_limit = int(min(100 << 20,
                         max(16 << 20, 2 * block_elems * itemsize + (4 << 20))))

    p5f, p4f, p3f, p2f = pl.pallas_call(
        _fused_upsampling_kernel,
        out_shape=out_shape,
        grid_spec=pltpu.PrefetchScalarGridSpec(
            num_scalar_prefetch=0,
            grid=grid,
            in_specs=in_specs,
            out_specs=out_specs,
        ),
        compiler_params=pltpu.CompilerParams(
            dimension_semantics=("parallel",),
            vmem_limit_bytes=vmem_limit,
        ),
    )(x2d, w, b2d)

    # Free (metadata-only) reshapes back to NHWC.
    p5 = p5f.reshape(N, H, W, Cout)
    p4 = p4f.reshape(N, 2 * H, 2 * W, Cout)
    p3 = p3f.reshape(N, 4 * H, 4 * W, Cout)
    p2 = p2f.reshape(N, 8 * H, 8 * W, Cout)

    # PyTorch returns NCHW; keep NHWC inside the kernel, transpose at the edge.
    to_nchw = lambda t: jnp.transpose(t, (0, 3, 1, 2))
    return [to_nchw(p2), to_nchw(p3), to_nchw(p4), to_nchw(p5)]


# ----------------------------------------------------------------------------
# Reference (plain JAX) for verification
# ----------------------------------------------------------------------------
def _reference(x_nchw, w, b):
    x_nhwc = jnp.transpose(x_nchw, (0, 2, 3, 1))
    p5 = jnp.einsum("nhwc,co->nhwo", x_nhwc, w) + b
    up = lambda t: jnp.repeat(jnp.repeat(t, 2, axis=1), 2, axis=2)
    p4 = up(p5)
    p3 = up(p4)
    p2 = up(p3)
    to_nchw = lambda t: jnp.transpose(t, (0, 3, 1, 2))
    return [to_nchw(p2), to_nchw(p3), to_nchw(p4), to_nchw(p5)]


if __name__ == "__main__":
    key = jax.random.PRNGKey(0)
    kx, kw, kb = jax.random.split(key, 3)

    N, C_IN, C_OUT, H, W = 2, 512, 256, 8, 8   # channels fixed by the module
    x = jax.random.normal(kx, (N, C_IN, H, W), dtype=jnp.float32)
    # Conv2d(512, 256, kernel_size=1) weight is (256, 512, 1, 1); stored here as
    # the equivalent (Cin, Cout) matmul weight, deterministically initialized.
    w = jax.random.normal(kw, (C_IN, C_OUT), dtype=jnp.float32) * 0.02
    b = jax.random.normal(kb, (C_OUT,), dtype=jnp.float32) * 0.02

    outs = upsampling_forward(x, w, b)
    outs = [jax.block_until_ready(o) for o in outs]

    refs = _reference(x, w, b)
    expected_shapes = [(N, C_OUT, 8 * H, 8 * W), (N, C_OUT, 4 * H, 4 * W),
                       (N, C_OUT, 2 * H, 2 * W), (N, C_OUT, H, W)]
    for o, r, s in zip(outs, refs, expected_shapes):
        assert o.shape == s, (o.shape, s)
        err = float(jnp.max(jnp.abs(o - r)))
        assert jnp.allclose(o, r, atol=1e-4, rtol=1e-4), err

    print("KERNEL_OK")
</pallas_src>

<mosaic_0001>
module attributes {stable_mosaic.version = 11 : i64} {
  func.func @_fused_upsampling_kernel(%arg0: i32, %arg1: memref<32x512xf32, #tpu.memory_space<vmem>>, %arg2: memref<512x256xf32, #tpu.memory_space<vmem>>, %arg3: memref<1x256xf32, #tpu.memory_space<vmem>>, %arg4: memref<32x256xf32, #tpu.memory_space<vmem>>, %arg5: memref<4x2x8x512xf32, #tpu.memory_space<vmem>>, %arg6: memref<4x4x8x1024xf32, #tpu.memory_space<vmem>>, %arg7: memref<4x8x8x2048xf32, #tpu.memory_space<vmem>>) attributes {dimension_semantics = [#tpu.dimension_semantics<parallel>], iteration_bounds = array<i64: 4>, scalar_prefetch = 0 : i64, scratch_operands = 0 : i64, tpu.core_type = #tpu.core_type<tc>, window_params = [{transform_indices = @transform_0, window_bounds = array<i64: 32, 512>}, {pipeline_mode = #tpu.pipeline_mode<synchronous>, transform_indices = @transform_1, window_bounds = array<i64: 512, 256>}, {pipeline_mode = #tpu.pipeline_mode<synchronous>, transform_indices = @transform_2, window_bounds = array<i64: 1, 256>}, {transform_indices = @transform_3, window_bounds = array<i64: 32, 256>}, {transform_indices = @transform_4, window_bounds = array<i64: 4, 2, 8, 512>}, {transform_indices = @transform_5, window_bounds = array<i64: 4, 4, 8, 1024>}, {transform_indices = @transform_6, window_bounds = array<i64: 4, 8, 8, 2048>}]} {
    %c0 = arith.constant 0 : index
    %c0_0 = arith.constant 0 : index
    %0 = vector.load %arg1[%c0, %c0_0] : memref<32x512xf32, #tpu.memory_space<vmem>>, vector<32x512xf32>
    %c0_1 = arith.constant 0 : index
    %c0_2 = arith.constant 0 : index
    %1 = vector.load %arg2[%c0_1, %c0_2] : memref<512x256xf32, #tpu.memory_space<vmem>>, vector<512x256xf32>
    %cst = arith.constant dense<0.000000e+00> : vector<32x256xf32>
    %2 = tpu.matmul %0, %1, %cst {dimension_numbers = #tpu.dot_dimension_numbers<[1], [0], [0], [1], [0, 0, 1, 1], [], []>} : vector<32x512xf32>, vector<512x256xf32>, vector<32x256xf32> -> vector<32x256xf32>
    %c0_3 = arith.constant 0 : index
    %c0_4 = arith.constant 0 : index
    %3 = vector.load %arg3[%c0_3, %c0_4] : memref<1x256xf32, #tpu.memory_space<vmem>>, vector<1x256xf32>
    %4 = vector.broadcast %3 : vector<1x256xf32> to vector<32x256xf32>
    %5 = arith.addf %2, %4 : vector<32x256xf32>
    %c0_5 = arith.constant 0 : index
    %c0_6 = arith.constant 0 : index
    %6 = vector.load %arg4[%c0_5, %c0_6] : memref<32x256xf32, #tpu.memory_space<vmem>>, vector<32x256xf32>
    tpu.vector_store %arg4[%c0_5, %c0_6], %5 {strides = array<i32>} : memref<32x256xf32, #tpu.memory_space<vmem>>, vector<32x256xf32>,
    %7 = vector.shape_cast %5 : vector<32x256xf32> to vector<4x8x256xf32>
    %8 = vector.shape_cast %7 : vector<4x8x256xf32> to vector<4x1x8x256xf32>
    %c0_7 = arith.constant 0 : index
    %c0_8 = arith.constant 0 : index
    %c0_9 = arith.constant 0 : index
    %c0_10 = arith.constant 0 : index
    %9 = vector.load %arg5[%c0_7, %c0_8, %c0_9, %c0_10] : memref<4x2x8x512xf32, #tpu.memory_space<vmem>>, vector<4x1x8x256xf32>
    tpu.vector_store %arg5[%c0_7, %c0_8, %c0_9, %c0_10], %8 {strides = array<i32>} : memref<4x2x8x512xf32, #tpu.memory_space<vmem>>, vector<4x1x8x256xf32>,
    %c0_11 = arith.constant 0 : index
    %c0_12 = arith.constant 0 : index
    %c0_13 = arith.constant 0 : index
    %c256 = arith.constant 256 : index
    %10 = vector.load %arg5[%c0_11, %c0_12, %c0_13, %c256] : memref<4x2x8x512xf32, #tpu.memory_space<vmem>>, vector<4x1x8x256xf32>
    tpu.vector_store %arg5[%c0_11, %c0_12, %c0_13, %c256], %8 {strides = array<i32>} : memref<4x2x8x512xf32, #tpu.memory_space<vmem>>, vector<4x1x8x256xf32>,
    %c0_14 = arith.constant 0 : index
    %c1 = arith.constant 1 : index
    %c0_15 = arith.constant 0 : index
    %c0_16 = arith.constant 0 : index
    %11 = vector.load %arg5[%c0_14, %c1, %c0_15, %c0_16] : memref<4x2x8x512xf32, #tpu.memory_space<vmem>>, vector<4x1x8x256xf32>
    tpu.vector_store %arg5[%c0_14, %c1, %c0_15, %c0_16], %8 {strides = array<i32>} : memref<4x2x8x512xf32, #tpu.memory_space<vmem>>, vector<4x1x8x256xf32>,
    %c0_17 = arith.constant 0 : index
    %c1_18 = arith.constant 1 : index
    %c0_19 = arith.constant 0 : index
    %c256_20 = arith.constant 256 : index
    %12 = vector.load %arg5[%c0_17, %c1_18, %c0_19, %c256_20] : memref<4x2x8x512xf32, #tpu.memory_space<vmem>>, vector<4x1x8x256xf32>
    tpu.vector_store %arg5[%c0_17, %c1_18, %c0_19, %c256_20], %8 {strides = array<i32>} : memref<4x2x8x512xf32, #tpu.memory_space<vmem>>, vector<4x1x8x256xf32>,
    %c0_21 = arith.constant 0 : index
    %c0_22 = arith.constant 0 : index
    %c0_23 = arith.constant 0 : index
    %c0_24 = arith.constant 0 : index
    %13 = vector.load %arg6[%c0_21, %c0_22, %c0_23, %c0_24] : memref<4x4x8x1024xf32, #tpu.memory_space<vmem>>, vector<4x1x8x256xf32>
    tpu.vector_store %arg6[%c0_21, %c0_22, %c0_23, %c0_24], %8 {strides = array<i32>} : memref<4x4x8x1024xf32, #tpu.memory_space<vmem>>, vector<4x1x8x256xf32>,
    %c0_25 = arith.constant 0 : index
    %c0_26 = arith.constant 0 : index
    %c0_27 = arith.constant 0 : index
    %c256_28 = arith.constant 256 : index
    %14 = vector.load %arg6[%c0_25, %c0_26, %c0_27, %c256_28] : memref<4x4x8x1024xf32, #tpu.memory_space<vmem>>, vector<4x1x8x256xf32>
    tpu.vector_store %arg6[%c0_25, %c0_26, %c0_27, %c256_28], %8 {strides = array<i32>} : memref<4x4x8x1024xf32, #tpu.memory_space<vmem>>, vector<4x1x8x256xf32>,
    %c0_29 = arith.constant 0 : index
    %c0_30 = arith.constant 0 : index
    %c0_31 = arith.constant 0 : index
    %c512 = arith.constant 512 : index
    %15 = vector.load %arg6[%c0_29, %c0_30, %c0_31, %c512] : memref<4x4x8x1024xf32, #tpu.memory_space<vmem>>, vector<4x1x8x256xf32>
    tpu.vector_store %arg6[%c0_29, %c0_30, %c0_31, %c512], %8 {strides = array<i32>} : memref<4x4x8x1024xf32, #tpu.memory_space<vmem>>, vector<4x1x8x256xf32>,
    %c0_32 = arith.constant 0 : index
    %c0_33 = arith.constant 0 : index
    %c0_34 = arith.constant 0 : index
    %c768 = arith.constant 768 : index
    %16 = vector.load %arg6[%c0_32, %c0_33, %c0_34, %c768] : memref<4x4x8x1024xf32, #tpu.memory_space<vmem>>, vector<4x1x8x256xf32>
    tpu.vector_store %arg6[%c0_32, %c0_33, %c0_34, %c768], %8 {strides = array<i32>} : memref<4x4x8x1024xf32, #tpu.memory_space<vmem>>, vector<4x1x8x256xf32>,
    %c0_35 = arith.constant 0 : index
    %c1_36 = arith.constant 1 : index
    %c0_37 = arith.constant 0 : index
    %c0_38 = arith.constant 0 : index
    %17 = vector.load %arg6[%c0_35, %c1_36, %c0_37, %c0_38] : memref<4x4x8x1024xf32, #tpu.memory_space<vmem>>, vector<4x1x8x256xf32>
    tpu.vector_store %arg6[%c0_35, %c1_36, %c0_37, %c0_38], %8 {strides = array<i32>} : memref<4x4x8x1024xf32, #tpu.memory_space<vmem>>, vector<4x1x8x256xf32>,
    %c0_39 = arith.constant 0 : index
    %c1_40 = arith.constant 1 : index
    %c0_41 = arith.constant 0 : index
    %c256_42 = arith.constant 256 : index
    %18 = vector.load %arg6[%c0_39, %c1_40, %c0_41, %c256_42] : memref<4x4x8x1024xf32, #tpu.memory_space<vmem>>, vector<4x1x8x256xf32>
    tpu.vector_store %arg6[%c0_39, %c1_40, %c0_41, %c256_42], %8 {strides = array<i32>} : memref<4x4x8x1024xf32, #tpu.memory_space<vmem>>, vector<4x1x8x256xf32>,
    %c0_43 = arith.constant 0 : index
    %c1_44 = arith.constant 1 : index
    %c0_45 = arith.constant 0 : index
    %c512_46 = arith.constant 512 : index
    %19 = vector.load %arg6[%c0_43, %c1_44, %c0_45, %c512_46] : memref<4x4x8x1024xf32, #tpu.memory_space<vmem>>, vector<4x1x8x256xf32>
    tpu.vector_store %arg6[%c0_43, %c1_44, %c0_45, %c512_46], %8 {strides = array<i32>} : memref<4x4x8x1024xf32, #tpu.memory_space<vmem>>, vector<4x1x8x256xf32>,
    %c0_47 = arith.constant 0 : index
    %c1_48 = arith.constant 1 : index
    %c0_49 = arith.constant 0 : index
    %c768_50 = arith.constant 768 : index
    %20 = vector.load %arg6[%c0_47, %c1_48, %c0_49, %c768_50] : memref<4x4x8x1024xf32, #tpu.memory_space<vmem>>, vector<4x1x8x256xf32>
    tpu.vector_store %arg6[%c0_47, %c1_48, %c0_49, %c768_50], %8 {strides = array<i32>} : memref<4x4x8x1024xf32, #tpu.memory_space<vmem>>, vector<4x1x8x256xf32>,
    %c0_51 = arith.constant 0 : index
    %c2 = arith.constant 2 : index
    %c0_52 = arith.constant 0 : index
    %c0_53 = arith.constant 0 : index
    %21 = vector.load %arg6[%c0_51, %c2, %c0_52, %c0_53] : memref<4x4x8x1024xf32, #tpu.memory_space<vmem>>, vector<4x1x8x256xf32>
    tpu.vector_store %arg6[%c0_51, %c2, %c0_52, %c0_53], %8 {strides = array<i32>} : memref<4x4x8x1024xf32, #tpu.memory_space<vmem>>, vector<4x1x8x256xf32>,
    %c0_54 = arith.constant 0 : index
    %c2_55 = arith.constant 2 : index
    %c0_56 = arith.constant 0 : index
    %c256_57 = arith.constant 256 : index
    %22 = vector.load %arg6[%c0_54, %c2_55, %c0_56, %c256_57] : memref<4x4x8x1024xf32, #tpu.memory_space<vmem>>, vector<4x1x8x256xf32>
    tpu.vector_store %arg6[%c0_54, %c2_55, %c0_56, %c256_57], %8 {strides = array<i32>} : memref<4x4x8x1024xf32, #tpu.memory_space<vmem>>, vector<4x1x8x256xf32>,
    %c0_58 = arith.constant 0 : index
    %c2_59 = arith.constant 2 : index
    %c0_60 = arith.constant 0 : index
    %c512_61 = arith.constant 512 : index
    %23 = vector.load %arg6[%c0_58, %c2_59, %c0_60, %c512_61] : memref<4x4x8x1024xf32, #tpu.memory_space<vmem>>, vector<4x1x8x256xf32>
    tpu.vector_store %arg6[%c0_58, %c2_59, %c0_60, %c512_61], %8 {strides = array<i32>} : memref<4x4x8x1024xf32, #tpu.memory_space<vmem>>, vector<4x1x8x256xf32>,
    %c0_62 = arith.constant 0 : index
    %c2_63 = arith.constant 2 : index
    %c0_64 = arith.constant 0 : index
    %c768_65 = arith.constant 768 : index
    %24 = vector.load %arg6[%c0_62, %c2_63, %c0_64, %c768_65] : memref<4x4x8x1024xf32, #tpu.memory_space<vmem>>, vector<4x1x8x256xf32>
    tpu.vector_store %arg6[%c0_62, %c2_63, %c0_64, %c768_65], %8 {strides = array<i32>} : memref<4x4x8x1024xf32, #tpu.memory_space<vmem>>, vector<4x1x8x256xf32>,
    %c0_66 = arith.constant 0 : index
    %c3 = arith.constant 3 : index
    %c0_67 = arith.constant 0 : index
    %c0_68 = arith.constant 0 : index
    %25 = vector.load %arg6[%c0_66, %c3, %c0_67, %c0_68] : memref<4x4x8x1024xf32, #tpu.memory_space<vmem>>, vector<4x1x8x256xf32>
    tpu.vector_store %arg6[%c0_66, %c3, %c0_67, %c0_68], %8 {strides = array<i32>} : memref<4x4x8x1024xf32, #tpu.memory_space<vmem>>, vector<4x1x8x256xf32>,
    %c0_69 = arith.constant 0 : index
    %c3_70 = arith.constant 3 : index
    %c0_71 = arith.constant 0 : index
    %c256_72 = arith.constant 256 : index
    %26 = vector.load %arg6[%c0_69, %c3_70, %c0_71, %c256_72] : memref<4x4x8x1024xf32, #tpu.memory_space<vmem>>, vector<4x1x8x256xf32>
    tpu.vector_store %arg6[%c0_69, %c3_70, %c0_71, %c256_72], %8 {strides = array<i32>} : memref<4x4x8x1024xf32, #tpu.memory_space<vmem>>, vector<4x1x8x256xf32>,
    %c0_73 = arith.constant 0 : index
    %c3_74 = arith.constant 3 : index
    %c0_75 = arith.constant 0 : index
    %c512_76 = arith.constant 512 : index
    %27 = vector.load %arg6[%c0_73, %c3_74, %c0_75, %c512_76] : memref<4x4x8x1024xf32, #tpu.memory_space<vmem>>, vector<4x1x8x256xf32>
    tpu.vector_store %arg6[%c0_73, %c3_74, %c0_75, %c512_76], %8 {strides = array<i32>} : memref<4x4x8x1024xf32, #tpu.memory_space<vmem>>, vector<4x1x8x256xf32>,
    %c0_77 = arith.constant 0 : index
    %c3_78 = arith.constant 3 : index
    %c0_79 = arith.constant 0 : index
    %c768_80 = arith.constant 768 : index
    %28 = vector.load %arg6[%c0_77, %c3_78, %c0_79, %c768_80] : memref<4x4x8x1024xf32, #tpu.memory_space<vmem>>, vector<4x1x8x256xf32>
    tpu.vector_store %arg6[%c0_77, %c3_78, %c0_79, %c768_80], %8 {strides = array<i32>} : memref<4x4x8x1024xf32, #tpu.memory_space<vmem>>, vector<4x1x8x256xf32>,
    %c0_81 = arith.constant 0 : index
    %c0_82 = arith.constant 0 : index
    %c0_83 = arith.constant 0 : index
    %c0_84 = arith.constant 0 : index
    %29 = vector.load %arg7[%c0_81, %c0_82, %c0_83, %c0_84] : memref<4x8x8x2048xf32, #tpu.memory_space<vmem>>, vector<4x1x8x256xf32>
    tpu.vector_store %arg7[%c0_81, %c0_82, %c0_83, %c0_84], %8 {strides = array<i32>} : memref<4x8x8x2048xf32, #tpu.memory_space<vmem>>, vector<4x1x8x256xf32>,
    %c0_85 = arith.constant 0 : index
    %c0_86 = arith.constant 0 : index
    %c0_87 = arith.constant 0 : index
    %c256_88 = arith.constant 256 : index
    %30 = vector.load %arg7[%c0_85, %c0_86, %c0_87, %c256_88] : memref<4x8x8x2048xf32, #tpu.memory_space<vmem>>, vector<4x1x8x256xf32>
    tpu.vector_store %arg7[%c0_85, %c0_86, %c0_87, %c256_88], %8 {strides = array<i32>} : memref<4x8x8x2048xf32, #tpu.memory_space<vmem>>, vector<4x1x8x256xf32>,
    %c0_89 = arith.constant 0 : index
    %c0_90 = arith.constant 0 : index
    %c0_91 = arith.constant 0 : index
    %c512_92 = arith.constant 512 : index
    %31 = vector.load %arg7[%c0_89, %c0_90, %c0_91, %c512_92] : memref<4x8x8x2048xf32, #tpu.memory_space<vmem>>, vector<4x1x8x256xf32>
    tpu.vector_store %arg7[%c0_89, %c0_90, %c0_91, %c512_92], %8 {strides = array<i32>} : memref<4x8x8x2048xf32, #tpu.memory_space<vmem>>, vector<4x1x8x256xf32>,
    %c0_93 = arith.constant 0 : index
    %c0_94 = arith.constant 0 : index
    %c0_95 = arith.constant 0 : index
    %c768_96 = arith.constant 768 : index
    %32 = vector.load %arg7[%c0_93, %c0_94, %c0_95, %c768_96] : memref<4x8x8x2048xf32, #tpu.memory_space<vmem>>, vector<4x1x8x256xf32>
    tpu.vector_store %arg7[%c0_93, %c0_94, %c0_95, %c768_96], %8 {strides = array<i32>} : memref<4x8x8x2048xf32, #tpu.memory_space<vmem>>, vector<4x1x8x256xf32>,
    %c0_97 = arith.constant 0 : index
    %c0_98 = arith.constant 0 : index
    %c0_99 = arith.constant 0 : index
    %c1024 = arith.constant 1024 : index
    %33 = vector.load %arg7[%c0_97, %c0_98, %c0_99, %c1024] : memref<4x8x8x2048xf32, #tpu.memory_space<vmem>>, vector<4x1x8x256xf32>
    tpu.vector_store %arg7[%c0_97, %c0_98, %c0_99, %c1024], %8 {strides = array<i32>} : memref<4x8x8x2048xf32, #tpu.memory_space<vmem>>, vector<4x1x8x256xf32>,
    %c0_100 = arith.constant 0 : index
    %c0_101 = arith.constant 0 : index
    %c0_102 = arith.constant 0 : index
    %c1280 = arith.constant 1280 : index
    %34 = vector.load %arg7[%c0_100, %c0_101, %c0_102, %c1280] : memref<4x8x8x2048xf32, #tpu.memory_space<vmem>>, vector<4x1x8x256xf32>
    tpu.vector_store %arg7[%c0_100, %c0_101, %c0_102, %c1280], %8 {strides = array<i32>} : memref<4x8x8x2048xf32, #tpu.memory_space<vmem>>, vector<4x1x8x256xf32>,
    %c0_103 = arith.constant 0 : index
    %c0_104 = arith.constant 0 : index
    %c0_105 = arith.constant 0 : index
    %c1536 = arith.constant 1536 : index
    %35 = vector.load %arg7[%c0_103, %c0_104, %c0_105, %c1536] : memref<4x8x8x2048xf32, #tpu.memory_space<vmem>>, vector<4x1x8x256xf32>
    tpu.vector_store %arg7[%c0_103, %c0_104, %c0_105, %c1536], %8 {strides = array<i32>} : memref<4x8x8x2048xf32, #tpu.memory_space<vmem>>, vector<4x1x8x256xf32>,
    %c0_106 = arith.constant 0 : index
    %c0_107 = arith.constant 0 : index
    %c0_108 = arith.constant 0 : index
    %c1792 = arith.constant 1792 : index
    %36 = vector.load %arg7[%c0_106, %c0_107, %c0_108, %c1792] : memref<4x8x8x2048xf32, #tpu.memory_space<vmem>>, vector<4x1x8x256xf32>
    tpu.vector_store %arg7[%c0_106, %c0_107, %c0_108, %c1792], %8 {strides = array<i32>} : memref<4x8x8x2048xf32, #tpu.memory_space<vmem>>, vector<4x1x8x256xf32>,
    %c0_109 = arith.constant 0 : index
    %c1_110 = arith.constant 1 : index
    %c0_111 = arith.constant 0 : index
    %c0_112 = arith.constant 0 : index
    %37 = vector.load %arg7[%c0_109, %c1_110, %c0_111, %c0_112] : memref<4x8x8x2048xf32, #tpu.memory_space<vmem>>, vector<4x1x8x256xf32>
    tpu.vector_store %arg7[%c0_109, %c1_110, %c0_111, %c0_112], %8 {strides = array<i32>} : memref<4x8x8x2048xf32, #tpu.memory_space<vmem>>, vector<4x1x8x256xf32>,
    %c0_113 = arith.constant 0 : index
    %c1_114 = arith.constant 1 : index
    %c0_115 = arith.constant 0 : index
    %c256_116 = arith.constant 256 : index
    %38 = vector.load %arg7[%c0_113, %c1_114, %c0_115, %c256_116] : memref<4x8x8x2048xf32, #tpu.memory_space<vmem>>, vector<4x1x8x256xf32>
    tpu.vector_store %arg7[%c0_113, %c1_114, %c0_115, %c256_116], %8 {strides = array<i32>} : memref<4x8x8x2048xf32, #tpu.memory_space<vmem>>, vector<4x1x8x256xf32>,
    %c0_117 = arith.constant 0 : index
    %c1_118 = arith.constant 1 : index
    %c0_119 = arith.constant 0 : index
    %c512_120 = arith.constant 512 : index
    %39 = vector.load %arg7[%c0_117, %c1_118, %c0_119, %c512_120] : memref<4x8x8x2048xf32, #tpu.memory_space<vmem>>, vector<4x1x8x256xf32>
    tpu.vector_store %arg7[%c0_117, %c1_118, %c0_119, %c512_120], %8 {strides = array<i32>} : memref<4x8x8x2048xf32, #tpu.memory_space<vmem>>, vector<4x1x8x256xf32>,
    %c0_121 = arith.constant 0 : index
    %c1_122 = arith.constant 1 : index
    %c0_123 = arith.constant 0 : index
    %c768_124 = arith.constant 768 : index
    %40 = vector.load %arg7[%c0_121, %c1_122, %c0_123, %c768_124] : memref<4x8x8x2048xf32, #tpu.memory_space<vmem>>, vector<4x1x8x256xf32>
    tpu.vector_store %arg7[%c0_121, %c1_122, %c0_123, %c768_124], %8 {strides = array<i32>} : memref<4x8x8x2048xf32, #tpu.memory_space<vmem>>, vector<4x1x8x256xf32>,
    %c0_125 = arith.constant 0 : index
    %c1_126 = arith.constant 1 : index
    %c0_127 = arith.constant 0 : index
    %c1024_128 = arith.constant 1024 : index
    %41 = vector.load %arg7[%c0_125, %c1_126, %c0_127, %c1024_128] : memref<4x8x8x2048xf32, #tpu.memory_space<vmem>>, vector<4x1x8x256xf32>
    tpu.vector_store %arg7[%c0_125, %c1_126, %c0_127, %c1024_128], %8 {strides = array<i32>} : memref<4x8x8x2048xf32, #tpu.memory_space<vmem>>, vector<4x1x8x256xf32>,
    %c0_129 = arith.constant 0 : index
    %c1_130 = arith.constant 1 : index
    %c0_131 = arith.constant 0 : index
    %c1280_132 = arith.constant 1280 : index
    %42 = vector.load %arg7[%c0_129, %c1_130, %c0_131, %c1280_132] : memref<4x8x8x2048xf32, #tpu.memory_space<vmem>>, vector<4x1x8x256xf32>
    tpu.vector_store %arg7[%c0_129, %c1_130, %c0_131, %c1280_132], %8 {strides = array<i32>} : memref<4x8x8x2048xf32, #tpu.memory_space<vmem>>, vector<4x1x8x256xf32>,
    %c0_133 = arith.constant 0 : index
    %c1_134 = arith.constant 1 : index
    %c0_135 = arith.constant 0 : index
    %c1536_136 = arith.constant 1536 : index
    %43 = vector.load %arg7[%c0_133, %c1_134, %c0_135, %c1536_136] : memref<4x8x8x2048xf32, #tpu.memory_space<vmem>>, vector<4x1x8x256xf32>
    tpu.vector_store %arg7[%c0_133, %c1_134, %c0_135, %c1536_136], %8 {strides = array<i32>} : memref<4x8x8x2048xf32, #tpu.memory_space<vmem>>, vector<4x1x8x256xf32>,
    %c0_137 = arith.constant 0 : index
    %c1_138 = arith.constant 1 : index
    %c0_139 = arith.constant 0 : index
    %c1792_140 = arith.constant 1792 : index
    %44 = vector.load %arg7[%c0_137, %c1_138, %c0_139, %c1792_140] : memref<4x8x8x2048xf32, #tpu.memory_space<vmem>>, vector<4x1x8x256xf32>
    tpu.vector_store %arg7[%c0_137, %c1_138, %c0_139, %c1792_140], %8 {strides = array<i32>} : memref<4x8x8x2048xf32, #tpu.memory_space<vmem>>, vector<4x1x8x256xf32>,
    %c0_141 = arith.constant 0 : index
    %c2_142 = arith.constant 2 : index
    %c0_143 = arith.constant 0 : index
    %c0_144 = arith.constant 0 : index
    %45 = vector.load %arg7[%c0_141, %c2_142, %c0_143, %c0_144] : memref<4x8x8x2048xf32, #tpu.memory_space<vmem>>, vector<4x1x8x256xf32>
    tpu.vector_store %arg7[%c0_141, %c2_142, %c0_143, %c0_144], %8 {strides = array<i32>} : memref<4x8x8x2048xf32, #tpu.memory_space<vmem>>, vector<4x1x8x256xf32>,
    %c0_145 = arith.constant 0 : index
    %c2_146 = arith.constant 2 : index
    %c0_147 = arith.constant 0 : index
    %c256_148 = arith.constant 256 : index
    %46 = vector.load %arg7[%c0_145, %c2_146, %c0_147, %c256_148] : memref<4x8x8x2048xf32, #tpu.memory_space<vmem>>, vector<4x1x8x256xf32>
    tpu.vector_store %arg7[%c0_145, %c2_146, %c0_147, %c256_148], %8 {strides = array<i32>} : memref<4x8x8x2048xf32, #tpu.memory_space<vmem>>, vector<4x1x8x256xf32>,
    %c0_149 = arith.constant 0 : index
    %c2_150 = arith.constant 2 : index
    %c0_151 = arith.constant 0 : index
    %c512_152 = arith.constant 512 : index
    %47 = vector.load %arg7[%c0_149, %c2_150, %c0_151, %c512_152] : memref<4x8x8x2048xf32, #tpu.memory_space<vmem>>, vector<4x1x8x256xf32>
    tpu.vector_store %arg7[%c0_149, %c2_150, %c0_151, %c512_152], %8 {strides = array<i32>} : memref<4x8x8x2048xf32, #tpu.memory_space<vmem>>, vector<4x1x8x256xf32>,
    %c0_153 = arith.constant 0 : index
    %c2_154 = arith.constant 2 : index
    %c0_155 = arith.constant 0 : index
    %c768_156 = arith.constant 768 : index
    %48 = vector.load %arg7[%c0_153, %c2_154, %c0_155, %c768_156] : memref<4x8x8x2048xf32, #tpu.memory_space<vmem>>, vector<4x1x8x256xf32>
    tpu.vector_store %arg7[%c0_153, %c2_154, %c0_155, %c768_156], %8 {strides = array<i32>} : memref<4x8x8x2048xf32, #tpu.memory_space<vmem>>, vector<4x1x8x256xf32>,
    %c0_157 = arith.constant 0 : index
    %c2_158 = arith.constant 2 : index
    %c0_159 = arith.constant 0 : index
    %c1024_160 = arith.constant 1024 : index
    %49 = vector.load %arg7[%c0_157, %c2_158, %c0_159, %c1024_160] : memref<4x8x8x2048xf32, #tpu.memory_space<vmem>>, vector<4x1x8x256xf32>
    tpu.vector_store %arg7[%c0_157, %c2_158, %c0_159, %c1024_160], %8 {strides = array<i32>} : memref<4x8x8x2048xf32, #tpu.memory_space<vmem>>, vector<4x1x8x256xf32>,
    %c0_161 = arith.constant 0 : index
    %c2_162 = arith.constant 2 : index
    %c0_163 = arith.constant 0 : index
    %c1280_164 = arith.constant 1280 : index
    %50 = vector.load %arg7[%c0_161, %c2_162, %c0_163, %c1280_164] : memref<4x8x8x2048xf32, #tpu.memory_space<vmem>>, vector<4x1x8x256xf32>
    tpu.vector_store %arg7[%c0_161, %c2_162, %c0_163, %c1280_164], %8 {strides = array<i32>} : memref<4x8x8x2048xf32, #tpu.memory_space<vmem>>, vector<4x1x8x256xf32>,
    %c0_165 = arith.constant 0 : index
    %c2_166 = arith.constant 2 : index
    %c0_167 = arith.constant 0 : index
    %c1536_168 = arith.constant 1536 : index
    %51 = vector.load %arg7[%c0_165, %c2_166, %c0_167, %c1536_168] : memref<4x8x8x2048xf32, #tpu.memory_space<vmem>>, vector<4x1x8x256xf32>
    tpu.vector_store %arg7[%c0_165, %c2_166, %c0_167, %c1536_168], %8 {strides = array<i32>} : memref<4x8x8x2048xf32, #tpu.memory_space<vmem>>, vector<4x1x8x256xf32>,
    %c0_169 = arith.constant 0 : index
    %c2_170 = arith.constant 2 : index
    %c0_171 = arith.constant 0 : index
    %c1792_172 = arith.constant 1792 : index
    %52 = vector.load %arg7[%c0_169, %c2_170, %c0_171, %c1792_172] : memref<4x8x8x2048xf32, #tpu.memory_space<vmem>>, vector<4x1x8x256xf32>
    tpu.vector_store %arg7[%c0_169, %c2_170, %c0_171, %c1792_172], %8 {strides = array<i32>} : memref<4x8x8x2048xf32, #tpu.memory_space<vmem>>, vector<4x1x8x256xf32>,
    %c0_173 = arith.constant 0 : index
    %c3_174 = arith.constant 3 : index
    %c0_175 = arith.constant 0 : index
    %c0_176 = arith.constant 0 : index
    %53 = vector.load %arg7[%c0_173, %c3_174, %c0_175, %c0_176] : memref<4x8x8x2048xf32, #tpu.memory_space<vmem>>, vector<4x1x8x256xf32>
    tpu.vector_store %arg7[%c0_173, %c3_174, %c0_175, %c0_176], %8 {strides = array<i32>} : memref<4x8x8x2048xf32, #tpu.memory_space<vmem>>, vector<4x1x8x256xf32>,
    %c0_177 = arith.constant 0 : index
    %c3_178 = arith.constant 3 : index
    %c0_179 = arith.constant 0 : index
    %c256_180 = arith.constant 256 : index
    %54 = vector.load %arg7[%c0_177, %c3_178, %c0_179, %c256_180] : memref<4x8x8x2048xf32, #tpu.memory_space<vmem>>, vector<4x1x8x256xf32>
    tpu.vector_store %arg7[%c0_177, %c3_178, %c0_179, %c256_180], %8 {strides = array<i32>} : memref<4x8x8x2048xf32, #tpu.memory_space<vmem>>, vector<4x1x8x256xf32>,
    %c0_181 = arith.constant 0 : index
    %c3_182 = arith.constant 3 : index
    %c0_183 = arith.constant 0 : index
    %c512_184 = arith.constant 512 : index
    %55 = vector.load %arg7[%c0_181, %c3_182, %c0_183, %c512_184] : memref<4x8x8x2048xf32, #tpu.memory_space<vmem>>, vector<4x1x8x256xf32>
    tpu.vector_store %arg7[%c0_181, %c3_182, %c0_183, %c512_184], %8 {strides = array<i32>} : memref<4x8x8x2048xf32, #tpu.memory_space<vmem>>, vector<4x1x8x256xf32>,
    %c0_185 = arith.constant 0 : index
    %c3_186 = arith.constant 3 : index
    %c0_187 = arith.constant 0 : index
    %c768_188 = arith.constant 768 : index
    %56 = vector.load %arg7[%c0_185, %c3_186, %c0_187, %c768_188] : memref<4x8x8x2048xf32, #tpu.memory_space<vmem>>, vector<4x1x8x256xf32>
    tpu.vector_store %arg7[%c0_185, %c3_186, %c0_187, %c768_188], %8 {strides = array<i32>} : memref<4x8x8x2048xf32, #tpu.memory_space<vmem>>, vector<4x1x8x256xf32>,
    %c0_189 = arith.constant 0 : index
    %c3_190 = arith.constant 3 : index
    %c0_191 = arith.constant 0 : index
    %c1024_192 = arith.constant 1024 : index
    %57 = vector.load %arg7[%c0_189, %c3_190, %c0_191, %c1024_192] : memref<4x8x8x2048xf32, #tpu.memory_space<vmem>>, vector<4x1x8x256xf32>
    tpu.vector_store %arg7[%c0_189, %c3_190, %c0_191, %c1024_192], %8 {strides = array<i32>} : memref<4x8x8x2048xf32, #tpu.memory_space<vmem>>, vector<4x1x8x256xf32>,
    %c0_193 = arith.constant 0 : index
    %c3_194 = arith.constant 3 : index
    %c0_195 = arith.constant 0 : index
    %c1280_196 = arith.constant 1280 : index
    %58 = vector.load %arg7[%c0_193, %c3_194, %c0_195, %c1280_196] : memref<4x8x8x2048xf32, #tpu.memory_space<vmem>>, vector<4x1x8x256xf32>
    tpu.vector_store %arg7[%c0_193, %c3_194, %c0_195, %c1280_196], %8 {strides = array<i32>} : memref<4x8x8x2048xf32, #tpu.memory_space<vmem>>, vector<4x1x8x256xf32>,
    %c0_197 = arith.constant 0 : index
    %c3_198 = arith.constant 3 : index
    %c0_199 = arith.constant 0 : index
    %c1536_200 = arith.constant 1536 : index
    %59 = vector.load %arg7[%c0_197, %c3_198, %c0_199, %c1536_200] : memref<4x8x8x2048xf32, #tpu.memory_space<vmem>>, vector<4x1x8x256xf32>
    tpu.vector_store %arg7[%c0_197, %c3_198, %c0_199, %c1536_200], %8 {strides = array<i32>} : memref<4x8x8x2048xf32, #tpu.memory_space<vmem>>, vector<4x1x8x256xf32>,
    %c0_201 = arith.constant 0 : index
    %c3_202 = arith.constant 3 : index
    %c0_203 = arith.constant 0 : index
    %c1792_204 = arith.constant 1792 : index
    %60 = vector.load %arg7[%c0_201, %c3_202, %c0_203, %c1792_204] : memref<4x8x8x2048xf32, #tpu.memory_space<vmem>>, vector<4x1x8x256xf32>
    tpu.vector_store %arg7[%c0_201, %c3_202, %c0_203, %c1792_204], %8 {strides = array<i32>} : memref<4x8x8x2048xf32, #tpu.memory_space<vmem>>, vector<4x1x8x256xf32>,
    %c0_205 = arith.constant 0 : index
    %c4 = arith.constant 4 : index
    %c0_206 = arith.constant 0 : index
    %c0_207 = arith.constant 0 : index
    %61 = vector.load %arg7[%c0_205, %c4, %c0_206, %c0_207] : memref<4x8x8x2048xf32, #tpu.memory_space<vmem>>, vector<4x1x8x256xf32>
    tpu.vector_store %arg7[%c0_205, %c4, %c0_206, %c0_207], %8 {strides = array<i32>} : memref<4x8x8x2048xf32, #tpu.memory_space<vmem>>, vector<4x1x8x256xf32>,
    %c0_208 = arith.constant 0 : index
    %c4_209 = arith.constant 4 : index
    %c0_210 = arith.constant 0 : index
    %c256_211 = arith.constant 256 : index
    %62 = vector.load %arg7[%c0_208, %c4_209, %c0_210, %c256_211] : memref<4x8x8x2048xf32, #tpu.memory_space<vmem>>, vector<4x1x8x256xf32>
    tpu.vector_store %arg7[%c0_208, %c4_209, %c0_210, %c256_211], %8 {strides = array<i32>} : memref<4x8x8x2048xf32, #tpu.memory_space<vmem>>, vector<4x1x8x256xf32>,
    %c0_212 = arith.constant 0 : index
    %c4_213 = arith.constant 4 : index
    %c0_214 = arith.constant 0 : index
    %c512_215 = arith.constant 512 : index
    %63 = vector.load %arg7[%c0_212, %c4_213, %c0_214, %c512_215] : memref<4x8x8x2048xf32, #tpu.memory_space<vmem>>, vector<4x1x8x256xf32>
    tpu.vector_store %arg7[%c0_212, %c4_213, %c0_214, %c512_215], %8 {strides = array<i32>} : memref<4x8x8x2048xf32, #tpu.memory_space<vmem>>, vector<4x1x8x256xf32>,
    %c0_216 = arith.constant 0 : index
    %c4_217 = arith.constant 4 : index
    %c0_218 = arith.constant 0 : index
    %c768_219 = arith.constant 768 : index
    %64 = vector.load %arg7[%c0_216, %c4_217, %c0_218, %c768_219] : memref<4x8x8x2048xf32, #tpu.memory_space<vmem>>, vector<4x1x8x256xf32>
    tpu.vector_store %arg7[%c0_216, %c4_217, %c0_218, %c768_219], %8 {strides = array<i32>} : memref<4x8x8x2048xf32, #tpu.memory_space<vmem>>, vector<4x1x8x256xf32>,
    %c0_220 = arith.constant 0 : index
    %c4_221 = arith.constant 4 : index
    %c0_222 = arith.constant 0 : index
    %c1024_223 = arith.constant 1024 : index
    %65 = vector.load %arg7[%c0_220, %c4_221, %c0_222, %c1024_223] : memref<4x8x8x2048xf32, #tpu.memory_space<vmem>>, vector<4x1x8x256xf32>
    tpu.vector_store %arg7[%c0_220, %c4_221, %c0_222, %c1024_223], %8 {strides = array<i32>} : memref<4x8x8x2048xf32, #tpu.memory_space<vmem>>, vector<4x1x8x256xf32>,
    %c0_224 = arith.constant 0 : index
    %c4_225 = arith.constant 4 : index
    %c0_226 = arith.constant 0 : index
    %c1280_227 = arith.constant 1280 : index
    %66 = vector.load %arg7[%c0_224, %c4_225, %c0_226, %c1280_227] : memref<4x8x8x2048xf32, #tpu.memory_space<vmem>>, vector<4x1x8x256xf32>
    tpu.vector_store %arg7[%c0_224, %c4_225, %c0_226, %c1280_227], %8 {strides = array<i32>} : memref<4x8x8x2048xf32, #tpu.memory_space<vmem>>, vector<4x1x8x256xf32>,
    %c0_228 = arith.constant 0 : index
    %c4_229 = arith.constant 4 : index
    %c0_230 = arith.constant 0 : index
    %c1536_231 = arith.constant 1536 : index
    %67 = vector.load %arg7[%c0_228, %c4_229, %c0_230, %c1536_231] : memref<4x8x8x2048xf32, #tpu.memory_space<vmem>>, vector<4x1x8x256xf32>
    tpu.vector_store %arg7[%c0_228, %c4_229, %c0_230, %c1536_231], %8 {strides = array<i32>} : memref<4x8x8x2048xf32, #tpu.memory_space<vmem>>, vector<4x1x8x256xf32>,
    %c0_232 = arith.constant 0 : index
    %c4_233 = arith.constant 4 : index
    %c0_234 = arith.constant 0 : index
    %c1792_235 = arith.constant 1792 : index
    %68 = vector.load %arg7[%c0_232, %c4_233, %c0_234, %c1792_235] : memref<4x8x8x2048xf32, #tpu.memory_space<vmem>>, vector<4x1x8x256xf32>
    tpu.vector_store %arg7[%c0_232, %c4_233, %c0_234, %c1792_235], %8 {strides = array<i32>} : memref<4x8x8x2048xf32, #tpu.memory_space<vmem>>, vector<4x1x8x256xf32>,
    %c0_236 = arith.constant 0 : index
    %c5 = arith.constant 5 : index
    %c0_237 = arith.constant 0 : index
    %c0_238 = arith.constant 0 : index
    %69 = vector.load %arg7[%c0_236, %c5, %c0_237, %c0_238] : memref<4x8x8x2048xf32, #tpu.memory_space<vmem>>, vector<4x1x8x256xf32>
    tpu.vector_store %arg7[%c0_236, %c5, %c0_237, %c0_238], %8 {strides = array<i32>} : memref<4x8x8x2048xf32, #tpu.memory_space<vmem>>, vector<4x1x8x256xf32>,
    %c0_239 = arith.constant 0 : index
    %c5_240 = arith.constant 5 : index
    %c0_241 = arith.constant 0 : index
    %c256_242 = arith.constant 256 : index
    %70 = vector.load %arg7[%c0_239, %c5_240, %c0_241, %c256_242] : memref<4x8x8x2048xf32, #tpu.memory_space<vmem>>, vector<4x1x8x256xf32>
    tpu.vector_store %arg7[%c0_239, %c5_240, %c0_241, %c256_242], %8 {strides = array<i32>} : memref<4x8x8x2048xf32, #tpu.memory_space<vmem>>, vector<4x1x8x256xf32>,
    %c0_243 = arith.constant 0 : index
    %c5_244 = arith.constant 5 : index
    %c0_245 = arith.constant 0 : index
    %c512_246 = arith.constant 512 : index
    %71 = vector.load %arg7[%c0_243, %c5_244, %c0_245, %c512_246] : memref<4x8x8x2048xf32, #tpu.memory_space<vmem>>, vector<4x1x8x256xf32>
    tpu.vector_store %arg7[%c0_243, %c5_244, %c0_245, %c512_246], %8 {strides = array<i32>} : memref<4x8x8x2048xf32, #tpu.memory_space<vmem>>, vector<4x1x8x256xf32>,
    %c0_247 = arith.constant 0 : index
    %c5_248 = arith.constant 5 : index
    %c0_249 = arith.constant 0 : index
    %c768_250 = arith.constant 768 : index
    %72 = vector.load %arg7[%c0_247, %c5_248, %c0_249, %c768_250] : memref<4x8x8x2048xf32, #tpu.memory_space<vmem>>, vector<4x1x8x256xf32>
    tpu.vector_store %arg7[%c0_247, %c5_248, %c0_249, %c768_250], %8 {strides = array<i32>} : memref<4x8x8x2048xf32, #tpu.memory_space<vmem>>, vector<4x1x8x256xf32>,
    %c0_251 = arith.constant 0 : index
    %c5_252 = arith.constant 5 : index
    %c0_253 = arith.constant 0 : index
    %c1024_254 = arith.constant 1024 : index
    %73 = vector.load %arg7[%c0_251, %c5_252, %c0_253, %c1024_254] : memref<4x8x8x2048xf32, #tpu.memory_space<vmem>>, vector<4x1x8x256xf32>
    tpu.vector_store %arg7[%c0_251, %c5_252, %c0_253, %c1024_254], %8 {strides = array<i32>} : memref<4x8x8x2048xf32, #tpu.memory_space<vmem>>, vector<4x1x8x256xf32>,
    %c0_255 = arith.constant 0 : index
    %c5_256 = arith.constant 5 : index
    %c0_257 = arith.constant 0 : index
    %c1280_258 = arith.constant 1280 : index
    %74 = vector.load %arg7[%c0_255, %c5_256, %c0_257, %c1280_258] : memref<4x8x8x2048xf32, #tpu.memory_space<vmem>>, vector<4x1x8x256xf32>
    tpu.vector_store %arg7[%c0_255, %c5_256, %c0_257, %c1280_258], %8 {strides = array<i32>} : memref<4x8x8x2048xf32, #tpu.memory_space<vmem>>, vector<4x1x8x256xf32>,
    %c0_259 = arith.constant 0 : index
    %c5_260 = arith.constant 5 : index
    %c0_261 = arith.constant 0 : index
    %c1536_262 = arith.constant 1536 : index
    %75 = vector.load %arg7[%c0_259, %c5_260, %c0_261, %c1536_262] : memref<4x8x8x2048xf32, #tpu.memory_space<vmem>>, vector<4x1x8x256xf32>
    tpu.vector_store %arg7[%c0_259, %c5_260, %c0_261, %c1536_262], %8 {strides = array<i32>} : memref<4x8x8x2048xf32, #tpu.memory_space<vmem>>, vector<4x1x8x256xf32>,
    %c0_263 = arith.constant 0 : index
    %c5_264 = arith.constant 5 : index
    %c0_265 = arith.constant 0 : index
    %c1792_266 = arith.constant 1792 : index
    %76 = vector.load %arg7[%c0_263, %c5_264, %c0_265, %c1792_266] : memref<4x8x8x2048xf32, #tpu.memory_space<vmem>>, vector<4x1x8x256xf32>
    tpu.vector_store %arg7[%c0_263, %c5_264, %c0_265, %c1792_266], %8 {strides = array<i32>} : memref<4x8x8x2048xf32, #tpu.memory_space<vmem>>, vector<4x1x8x256xf32>,
    %c0_267 = arith.constant 0 : index
    %c6 = arith.constant 6 : index
    %c0_268 = arith.constant 0 : index
    %c0_269 = arith.constant 0 : index
    %77 = vector.load %arg7[%c0_267, %c6, %c0_268, %c0_269] : memref<4x8x8x2048xf32, #tpu.memory_space<vmem>>, vector<4x1x8x256xf32>
    tpu.vector_store %arg7[%c0_267, %c6, %c0_268, %c0_269], %8 {strides = array<i32>} : memref<4x8x8x2048xf32, #tpu.memory_space<vmem>>, vector<4x1x8x256xf32>,
    %c0_270 = arith.constant 0 : index
    %c6_271 = arith.constant 6 : index
    %c0_272 = arith.constant 0 : index
    %c256_273 = arith.constant 256 : index
    %78 = vector.load %arg7[%c0_270, %c6_271, %c0_272, %c256_273] : memref<4x8x8x2048xf32, #tpu.memory_space<vmem>>, vector<4x1x8x256xf32>
    tpu.vector_store %arg7[%c0_270, %c6_271, %c0_272, %c256_273], %8 {strides = array<i32>} : memref<4x8x8x2048xf32, #tpu.memory_space<vmem>>, vector<4x1x8x256xf32>,
    %c0_274 = arith.constant 0 : index
    %c6_275 = arith.constant 6 : index
    %c0_276 = arith.constant 0 : index
    %c512_277 = arith.constant 512 : index
    %79 = vector.load %arg7[%c0_274, %c6_275, %c0_276, %c512_277] : memref<4x8x8x2048xf32, #tpu.memory_space<vmem>>, vector<4x1x8x256xf32>
    tpu.vector_store %arg7[%c0_274, %c6_275, %c0_276, %c512_277], %8 {strides = array<i32>} : memref<4x8x8x2048xf32, #tpu.memory_space<vmem>>, vector<4x1x8x256xf32>,
    %c0_278 = arith.constant 0 : index
    %c6_279 = arith.constant 6 : index
    %c0_280 = arith.constant 0 : index
    %c768_281 = arith.constant 768 : index
    %80 = vector.load %arg7[%c0_278, %c6_279, %c0_280, %c768_281] : memref<4x8x8x2048xf32, #tpu.memory_space<vmem>>, vector<4x1x8x256xf32>
    tpu.vector_store %arg7[%c0_278, %c6_279, %c0_280, %c768_281], %8 {strides = array<i32>} : memref<4x8x8x2048xf32, #tpu.memory_space<vmem>>, vector<4x1x8x256xf32>,
    %c0_282 = arith.constant 0 : index
    %c6_283 = arith.constant 6 : index
    %c0_284 = arith.constant 0 : index
    %c1024_285 = arith.constant 1024 : index
    %81 = vector.load %arg7[%c0_282, %c6_283, %c0_284, %c1024_285] : memref<4x8x8x2048xf32, #tpu.memory_space<vmem>>, vector<4x1x8x256xf32>
    tpu.vector_store %arg7[%c0_282, %c6_283, %c0_284, %c1024_285], %8 {strides = array<i32>} : memref<4x8x8x2048xf32, #tpu.memory_space<vmem>>, vector<4x1x8x256xf32>,
    %c0_286 = arith.constant 0 : index
    %c6_287 = arith.constant 6 : index
    %c0_288 = arith.constant 0 : index
    %c1280_289 = arith.constant 1280 : index
    %82 = vector.load %arg7[%c0_286, %c6_287, %c0_288, %c1280_289] : memref<4x8x8x2048xf32, #tpu.memory_space<vmem>>, vector<4x1x8x256xf32>
    tpu.vector_store %arg7[%c0_286, %c6_287, %c0_288, %c1280_289], %8 {strides = array<i32>} : memref<4x8x8x2048xf32, #tpu.memory_space<vmem>>, vector<4x1x8x256xf32>,
    %c0_290 = arith.constant 0 : index
    %c6_291 = arith.constant 6 : index
    %c0_292 = arith.constant 0 : index
    %c1536_293 = arith.constant 1536 : index
    %83 = vector.load %arg7[%c0_290, %c6_291, %c0_292, %c1536_293] : memref<4x8x8x2048xf32, #tpu.memory_space<vmem>>, vector<4x1x8x256xf32>
    tpu.vector_store %arg7[%c0_290, %c6_291, %c0_292, %c1536_293], %8 {strides = array<i32>} : memref<4x8x8x2048xf32, #tpu.memory_space<vmem>>, vector<4x1x8x256xf32>,
    %c0_294 = arith.constant 0 : index
    %c6_295 = arith.constant 6 : index
    %c0_296 = arith.constant 0 : index
    %c1792_297 = arith.constant 1792 : index
    %84 = vector.load %arg7[%c0_294, %c6_295, %c0_296, %c1792_297] : memref<4x8x8x2048xf32, #tpu.memory_space<vmem>>, vector<4x1x8x256xf32>
    tpu.vector_store %arg7[%c0_294, %c6_295, %c0_296, %c1792_297], %8 {strides = array<i32>} : memref<4x8x8x2048xf32, #tpu.memory_space<vmem>>, vector<4x1x8x256xf32>,
    %c0_298 = arith.constant 0 : index
    %c7 = arith.constant 7 : index
    %c0_299 = arith.constant 0 : index
    %c0_300 = arith.constant 0 : index
    %85 = vector.load %arg7[%c0_298, %c7, %c0_299, %c0_300] : memref<4x8x8x2048xf32, #tpu.memory_space<vmem>>, vector<4x1x8x256xf32>
    tpu.vector_store %arg7[%c0_298, %c7, %c0_299, %c0_300], %8 {strides = array<i32>} : memref<4x8x8x2048xf32, #tpu.memory_space<vmem>>, vector<4x1x8x256xf32>,
    %c0_301 = arith.constant 0 : index
    %c7_302 = arith.constant 7 : index
    %c0_303 = arith.constant 0 : index
    %c256_304 = arith.constant 256 : index
    %86 = vector.load %arg7[%c0_301, %c7_302, %c0_303, %c256_304] : memref<4x8x8x2048xf32, #tpu.memory_space<vmem>>, vector<4x1x8x256xf32>
    tpu.vector_store %arg7[%c0_301, %c7_302, %c0_303, %c256_304], %8 {strides = array<i32>} : memref<4x8x8x2048xf32, #tpu.memory_space<vmem>>, vector<4x1x8x256xf32>,
    %c0_305 = arith.constant 0 : index
    %c7_306 = arith.constant 7 : index
    %c0_307 = arith.constant 0 : index
    %c512_308 = arith.constant 512 : index
    %87 = vector.load %arg7[%c0_305, %c7_306, %c0_307, %c512_308] : memref<4x8x8x2048xf32, #tpu.memory_space<vmem>>, vector<4x1x8x256xf32>
    tpu.vector_store %arg7[%c0_305, %c7_306, %c0_307, %c512_308], %8 {strides = array<i32>} : memref<4x8x8x2048xf32, #tpu.memory_space<vmem>>, vector<4x1x8x256xf32>,
    %c0_309 = arith.constant 0 : index
    %c7_310 = arith.constant 7 : index
    %c0_311 = arith.constant 0 : index
    %c768_312 = arith.constant 768 : index
    %88 = vector.load %arg7[%c0_309, %c7_310, %c0_311, %c768_312] : memref<4x8x8x2048xf32, #tpu.memory_space<vmem>>, vector<4x1x8x256xf32>
    tpu.vector_store %arg7[%c0_309, %c7_310, %c0_311, %c768_312], %8 {strides = array<i32>} : memref<4x8x8x2048xf32, #tpu.memory_space<vmem>>, vector<4x1x8x256xf32>,
    %c0_313 = arith.constant 0 : index
    %c7_314 = arith.constant 7 : index
    %c0_315 = arith.constant 0 : index
    %c1024_316 = arith.constant 1024 : index
    %89 = vector.load %arg7[%c0_313, %c7_314, %c0_315, %c1024_316] : memref<4x8x8x2048xf32, #tpu.memory_space<vmem>>, vector<4x1x8x256xf32>
    tpu.vector_store %arg7[%c0_313, %c7_314, %c0_315, %c1024_316], %8 {strides = array<i32>} : memref<4x8x8x2048xf32, #tpu.memory_space<vmem>>, vector<4x1x8x256xf32>,
    %c0_317 = arith.constant 0 : index
    %c7_318 = arith.constant 7 : index
    %c0_319 = arith.constant 0 : index
    %c1280_320 = arith.constant 1280 : index
    %90 = vector.load %arg7[%c0_317, %c7_318, %c0_319, %c1280_320] : memref<4x8x8x2048xf32, #tpu.memory_space<vmem>>, vector<4x1x8x256xf32>
    tpu.vector_store %arg7[%c0_317, %c7_318, %c0_319, %c1280_320], %8 {strides = array<i32>} : memref<4x8x8x2048xf32, #tpu.memory_space<vmem>>, vector<4x1x8x256xf32>,
    %c0_321 = arith.constant 0 : index
    %c7_322 = arith.constant 7 : index
    %c0_323 = arith.constant 0 : index
    %c1536_324 = arith.constant 1536 : index
    %91 = vector.load %arg7[%c0_321, %c7_322, %c0_323, %c1536_324] : memref<4x8x8x2048xf32, #tpu.memory_space<vmem>>, vector<4x1x8x256xf32>
    tpu.vector_store %arg7[%c0_321, %c7_322, %c0_323, %c1536_324], %8 {strides = array<i32>} : memref<4x8x8x2048xf32, #tpu.memory_space<vmem>>, vector<4x1x8x256xf32>,
    %c0_325 = arith.constant 0 : index
    %c7_326 = arith.constant 7 : index
    %c0_327 = arith.constant 0 : index
    %c1792_328 = arith.constant 1792 : index
    %92 = vector.load %arg7[%c0_325, %c7_326, %c0_327, %c1792_328] : memref<4x8x8x2048xf32, #tpu.memory_space<vmem>>, vector<4x1x8x256xf32>
    tpu.vector_store %arg7[%c0_325, %c7_326, %c0_327, %c1792_328], %8 {strides = array<i32>} : memref<4x8x8x2048xf32, #tpu.memory_space<vmem>>, vector<4x1x8x256xf32>,
    return
  }
  func.func @transform_0(%arg0: i32) -> (i32, i32) {
    %c0_i32 = arith.constant 0 : i32
    %c0_i32_0 = arith.constant 0 : i32
    return %arg0, %c0_i32 : i32, i32
  }
  func.func @transform_1(%arg0: i32) -> (i32, i32) {
    %c0_i32 = arith.constant 0 : i32
    %c0_i32_0 = arith.constant 0 : i32
    %c0_i32_1 = arith.constant 0 : i32
    return %c0_i32, %c0_i32_0 : i32, i32
  }
  func.func @transform_2(%arg0: i32) -> (i32, i32) {
    %c0_i32 = arith.constant 0 : i32
    %c0_i32_0 = arith.constant 0 : i32
    %c0_i32_1 = arith.constant 0 : i32
    return %c0_i32, %c0_i32_0 : i32, i32
  }
  func.func @transform_3(%arg0: i32) -> (i32, i32) {
    %c0_i32 = arith.constant 0 : i32
    %c0_i32_0 = arith.constant 0 : i32
    return %arg0, %c0_i32 : i32, i32
  }
  func.func @transform_4(%arg0: i32) -> (i32, i32, i32, i32) {
    %c0_i32 = arith.constant 0 : i32
    %c0_i32_0 = arith.constant 0 : i32
    %c0_i32_1 = arith.constant 0 : i32
    %c0_i32_2 = arith.constant 0 : i32
    return %arg0, %c0_i32, %c0_i32_0, %c0_i32_1 : i32, i32, i32, i32
  }
  func.func @transform_5(%arg0: i32) -> (i32, i32, i32, i32) {
    %c0_i32 = arith.constant 0 : i32
    %c0_i32_0 = arith.constant 0 : i32
    %c0_i32_1 = arith.constant 0 : i32
    %c0_i32_2 = arith.constant 0 : i32
    return %arg0, %c0_i32, %c0_i32_0, %c0_i32_1 : i32, i32, i32, i32
  }
  func.func @transform_6(%arg0: i32) -> (i32, i32, i32, i32) {
    %c0_i32 = arith.constant 0 : i32
    %c0_i32_0 = arith.constant 0 : i32
    %c0_i32_1 = arith.constant 0 : i32
    %c0_i32_2 = arith.constant 0 : i32
    return %arg0, %c0_i32, %c0_i32_0, %c0_i32_1 : i32, i32, i32, i32
  }
}

</mosaic_0001>

<llo_original>
// kernel: tpu_custom_call.1
$region0: #{tpu_custom_call.1}
  #allocation0 [shape = 'u32[]', space=smem, size = 0x4, offset = 0x4, fixed_abs, tag = 'smem constant byte address 0x4 - core index']
  #allocation1 [shape = 'u32[72,128]{1,0:T(1,128)}', space=vmem, size = 0x9000, scoped, tag = 'internal scratch']
  %s0 = inlined_call_operand.hbm [shape: f32[128,512], index: 0, kind: input, shape index: {}]
  %s1 = inlined_call_operand.hbm [shape: f32[512,256], index: 1, kind: input, shape index: {}]
  %s2 = inlined_call_operand.hbm [shape: f32[1,256], index: 2, kind: input, shape index: {}]
  %s3 = inlined_call_operand.hbm [shape: f32[128,256], index: 3, kind: output, shape index: {0}]
  %s4 = inlined_call_operand.hbm [shape: f32[16,2,8,512], index: 4, kind: output, shape index: {1}]
  %s5 = inlined_call_operand.hbm [shape: f32[16,4,8,1024], index: 5, kind: output, shape index: {2}]
  %s6 = inlined_call_operand.hbm [shape: f32[16,8,8,2048], index: 6, kind: output, shape index: {3}]
  %7 = xla_tuple %s3, %s4, %s5, %s6
  %s8 = sld [smem:[#allocation0]]
  $region81: #{tpu_custom_call.1} parent=0
    _
  %s10 = ssub.s32 1, %s8
  %s11 = scalar_select 0, %s10, %s8
  $region1: #{tpu_custom_call.1} parent=0
    #allocation2 [shape = 'u8[131072]{0}', space=vmem, size = 0x20000, scoped, tag = 'input window, operand 0']
    #allocation3 [shape = 's32[2]{0}', space=sflag, size = 0x8, scoped, tag = 'scoped memory for tpu_custom_call.1']
    #allocation4 [shape = 's32[2]{0}', space=sflag, size = 0x8, scoped, tag = 'scoped memory for tpu_custom_call.1']
    #allocation5 [shape = 'u8[524288]{0}', space=vmem, size = 0x80000, scoped, tag = 'input window, operand 1, single buffered']
    #allocation6 [shape = 's32[1]{0}', space=sflag, size = 0x4, scoped, tag = 'scoped memory for tpu_custom_call.1']
    #allocation7 [shape = 'u8[1024]{0}', space=vmem, size = 0x400, scoped, tag = 'input window, operand 2, single buffered']
    #allocation8 [shape = 'u8[65536]{0}', space=vmem, size = 0x10000, scoped, tag = 'output window, operand 0']
    #allocation9 [shape = 'u8[262144]{0}', space=vmem, size = 0x40000, scoped, tag = 'output window, operand 1']
    #allocation10 [shape = 's32[2]{0}', space=sflag, size = 0x8, scoped, tag = 'scoped memory for tpu_custom_call.1']
    #allocation11 [shape = 'u8[1048576]{0}', space=vmem, size = 0x100000, scoped, tag = 'output window, operand 2']
    #allocation12 [shape = 'u8[4194304]{0}', space=vmem, size = 0x400000, scoped, tag = 'output window, operand 3']
    #allocation13 [shape = 's32[2]{0}', space=sflag, size = 0x8, scoped, tag = 'scoped memory for tpu_custom_call.1']
    %12 = vsyncpa [#allocation3], 0
    %s13 = scalar_lea.sflag [#allocation3], 1
    %14 = vsyncpa %s13, 0
    %15 = vsyncpa [#allocation6], 0
    %16 = vsyncpa [#allocation4], 0
    %s17 = scalar_lea.sflag [#allocation4], 1
    %18 = vsyncpa %s17, 0
    %19 = vsyncpa [#allocation10], 0
    %s20 = scalar_lea.sflag [#allocation10], 1
    %21 = vsyncpa %s20, 0
    %22 = vsyncpa [#allocation13], 0
    %s23 = scalar_lea.sflag [#allocation13], 1
    %24 = vsyncpa %s23, 0
    loop: start=0, step=1, limit=6
    $region2: #{tpu_custom_call.1} parent=1 // loop_pre_header
      _
    $region3: #{tpu_custom_call.1} parent=1 // loop_header
      %s26 = sphi 0, %s30
      %p27 = scmp.ge.s32.totalorder %s26, 6
      %s36 = sphi 0, %s38
      %s39 = sphi 0, %s36
      %s40 = sphi 0, %s39
      %s56 = sphi 0, %s40
      %s60 = sphi 0, %s60
      %s62 = sphi 0, %s60
      %s63 = sphi 0, %s62
      %s77 = sphi 0, %s63
      %s81 = sphi 0, %s81
      %s83 = sphi 0, %s81
      %s84 = sphi 0, %s83
      %s98 = sphi 0, %s84
      %s104 = sphi 0, %s106
      %s107 = sphi 0, %s104
      %s108 = sphi 0, %s107
      %s124 = sphi 0, %s108
      %s130 = sphi 0, %s132
      %s133 = sphi 0, %s130
      %s134 = sphi 0, %s133
      %s150 = sphi 0, %s134
      %s156 = sphi 0, %s158
      %s159 = sphi 0, %s156
      %s160 = sphi 0, %s159
      %s176 = sphi 0, %s160
      %s182 = sphi 0, %s184
      %s185 = sphi 0, %s182
      %s186 = sphi 0, %s185
      %s202 = sphi 0, %s186
    $region4: #{tpu_custom_call.1} parent=1 // loop_header_branch
      %29 = sbr.rel (%p27) target = $region8
    $region5: #{tpu_custom_call.1} parent=1 // loop_body
      %s31 = ssub.s32 %s26, 1
      %s32 = ssub.s32 %s26, 2
      %s33 = sadd.s32 %s26, 1
      %s34 = ssub.s32 %s26, %s33
      %p35 = scmp.eq.s32.totalorder %s34, 0
      %s37 = sadd.s32 %s36, 1
      %s38 = scalar_select %p35, %s36, %s37
      %p41 = pneg %p35
      %p42 = scmp.eq.s32.totalorder %s26, 3
      %p43 = por %p41, %p42
      %p44 = scmp.ne.s32.totalorder %s36, %s39
      %p45 = scmp.eq.s32.totalorder %s26, 0
      %p46 = por %p44, %p45
      %p47 = scmp.ne.s32.totalorder %s36, %s39
      %p48 = scmp.eq.s32.totalorder %s31, 3
      %p49 = por %p47, %p48
      %p50 = scmp.ne.s32.totalorder %s39, %s40
      %p51 = scmp.eq.s32.totalorder %s31, 0
      %p52 = por %p50, %p51
      %p53 = scmp.ne.s32.totalorder %s39, %s40
      %p54 = scmp.eq.s32.totalorder %s32, 3
      %p55 = por %p53, %p54
      %p57 = scmp.ne.s32.totalorder %s40, %s56
      %p58 = scmp.eq.s32.totalorder %s32, 0
      %p59 = por %p57, %p58
      %s61 = sadd.s32 %s60, 1
      %p64 = scmp.eq.s32.totalorder %s26, 3
      %p65 = scmp.ne.s32.totalorder %s60, %s62
      %p66 = scmp.eq.s32.totalorder %s26, 0
      %p67 = por %p65, %p66
      %p68 = scmp.ne.s32.totalorder %s60, %s62
      %p69 = scmp.eq.s32.totalorder %s31, 3
      %p70 = por %p68, %p69
      %p71 = scmp.ne.s32.totalorder %s62, %s63
      %p72 = scmp.eq.s32.totalorder %s31, 0
      %p73 = por %p71, %p72
      %p74 = scmp.ne.s32.totalorder %s62, %s63
      %p75 = scmp.eq.s32.totalorder %s32, 3
      %p76 = por %p74, %p75
      %p78 = scmp.ne.s32.totalorder %s63, %s77
      %p79 = scmp.eq.s32.totalorder %s32, 0
      %p80 = por %p78, %p79
      %s82 = sadd.s32 %s81, 1
      %p85 = scmp.eq.s32.totalorder %s26, 3
      %p86 = scmp.ne.s32.totalorder %s81, %s83
      %p87 = scmp.eq.s32.totalorder %s26, 0
      %p88 = por %p86, %p87
      %p89 = scmp.ne.s32.totalorder %s81, %s83
      %p90 = scmp.eq.s32.totalorder %s31, 3
      %p91 = por %p89, %p90
      %p92 = scmp.ne.s32.totalorder %s83, %s84
      %p93 = scmp.eq.s32.totalorder %s31, 0
      %p94 = por %p92, %p93
      %p95 = scmp.ne.s32.totalorder %s83, %s84
      %p96 = scmp.eq.s32.totalorder %s32, 3
      %p97 = por %p95, %p96
      %p99 = scmp.ne.s32.totalorder %s84, %s98
      %p100 = scmp.eq.s32.totalorder %s32, 0
      %p101 = por %p99, %p100
      %s102 = ssub.s32 %s26, %s33
      %p103 = scmp.eq.s32.totalorder %s102, 0
      %s105 = sadd.s32 %s104, 1
      %s106 = scalar_select %p103, %s104, %s105
      %p109 = pneg %p103
      %p110 = scmp.eq.s32.totalorder %s26, 3
      %p111 = por %p109, %p110
      %p112 = scmp.ne.s32.totalorder %s104, %s107
      %p113 = scmp.eq.s32.totalorder %s26, 0
      %p114 = por %p112, %p113
      %p115 = scmp.ne.s32.totalorder %s104, %s107
      %p116 = scmp.eq.s32.totalorder %s31, 3
      %p117 = por %p115, %p116
      %p118 = scmp.ne.s32.totalorder %s107, %s108
      %p119 = scmp.eq.s32.totalorder %s31, 0
      %p120 = por %p118, %p119
      %p121 = scmp.ne.s32.totalorder %s107, %s108
      %p122 = scmp.eq.s32.totalorder %s32, 3
      %p123 = por %p121, %p122
      %p125 = scmp.ne.s32.totalorder %s108, %s124
      %p126 = scmp.eq.s32.totalorder %s32, 0
      %p127 = por %p125, %p126
      %s128 = ssub.s32 %s26, %s33
      %p129 = scmp.eq.s32.totalorder %s128, 0
      %s131 = sadd.s32 %s130, 1
      %s132 = scalar_select %p129, %s130, %s131
      %p135 = pneg %p129
      %p136 = scmp.eq.s32.totalorder %s26, 3
      %p137 = por %p135, %p136
      %p138 = scmp.ne.s32.totalorder %s130, %s133
      %p139 = scmp.eq.s32.totalorder %s26, 0
      %p140 = por %p138, %p139
      %p141 = scmp.ne.s32.totalorder %s130, %s133
      %p142 = scmp.eq.s32.totalorder %s31, 3
      %p143 = por %p141, %p142
      %p144 = scmp.ne.s32.totalorder %s133, %s134
      %p145 = scmp.eq.s32.totalorder %s31, 0
      %p146 = por %p144, %p145
      %p147 = scmp.ne.s32.totalorder %s133, %s134
      %p148 = scmp.eq.s32.totalorder %s32, 3
      %p149 = por %p147, %p148
      %p151 = scmp.ne.s32.totalorder %s134, %s150
      %p152 = scmp.eq.s32.totalorder %s32, 0
      %p153 = por %p151, %p152
      %s154 = ssub.s32 %s26, %s33
      %p155 = scmp.eq.s32.totalorder %s154, 0
      %s157 = sadd.s32 %s156, 1
      %s158 = scalar_select %p155, %s156, %s157
      %p161 = pneg %p155
      %p162 = scmp.eq.s32.totalorder %s26, 3
      %p163 = por %p161, %p162
      %p164 = scmp.ne.s32.totalorder %s156, %s159
      %p165 = scmp.eq.s32.totalorder %s26, 0
      %p166 = por %p164, %p165
      %p167 = scmp.ne.s32.totalorder %s156, %s159
      %p168 = scmp.eq.s32.totalorder %s31, 3
      %p169 = por %p167, %p168
      %p170 = scmp.ne.s32.totalorder %s159, %s160
      %p171 = scmp.eq.s32.totalorder %s31, 0
      %p172 = por %p170, %p171
      %p173 = scmp.ne.s32.totalorder %s159, %s160
      %p174 = scmp.eq.s32.totalorder %s32, 3
      %p175 = por %p173, %p174
      %p177 = scmp.ne.s32.totalorder %s160, %s176
      %p178 = scmp.eq.s32.totalorder %s32, 0
      %p179 = por %p177, %p178
      %s180 = ssub.s32 %s26, %s33
      %p181 = scmp.eq.s32.totalorder %s180, 0
      %s183 = sadd.s32 %s182, 1
      %s184 = scalar_select %p181, %s182, %s183
      %p187 = pneg %p181
      %p188 = scmp.eq.s32.totalorder %s26, 3
      %p189 = por %p187, %p188
      %p190 = scmp.ne.s32.totalorder %s182, %s185
      %p191 = scmp.eq.s32.totalorder %s26, 0
      %p192 = por %p190, %p191
      %p193 = scmp.ne.s32.totalorder %s182, %s185
      %p194 = scmp.eq.s32.totalorder %s31, 3
      %p195 = por %p193, %p194
      %p196 = scmp.ne.s32.totalorder %s185, %s186
      %p197 = scmp.eq.s32.totalorder %s31, 0
      %p198 = por %p196, %p197
      %p199 = scmp.ne.s32.totalorder %s185, %s186
      %p200 = scmp.eq.s32.totalorder %s32, 3
      %p201 = por %p199, %p200
      %p203 = scmp.ne.s32.totalorder %s186, %s202
      %p204 = scmp.eq.s32.totalorder %s32, 0
      %p205 = por %p203, %p204
      %p206 = scmp.le.s32.totalorder 1, %s26
      %p207 = scmp.lt.s32.totalorder %s26, 5
      %p208 = pnand %p206, %p207
      %p209 = pneg %p208
      // Predicated region
      $region9: #{tpu_custom_call.1} parent=5 // pred_check
        _
      $region10: #{tpu_custom_call.1} parent=5 // pred_check_branch
        %211 = sbr.rel (%p208) target = $region12
      $region11: #{tpu_custom_call.1} parent=5 // pred_region
        %s212 = ssub.s32 %s26, 1
        // Predicated region
        $region13: #{tpu_custom_call.1} parent=11 // pred_check
          %p213 = pneg %p73
        $region14: #{tpu_custom_call.1} parent=11 // pred_check_branch
          %215 = sbr.rel (%p213) target = $region16
        $region15: #{tpu_custom_call.1} parent=11 // pred_region
          %217 = vsyncadd [#allocation6], 0
          %s218 = sshll.u32 %s1, 4
          %s219 = int_to_ptr.hbm [resolvable:$true] %s218
          %s220 = sshll.u32 [#allocation5], 4
          %s221 = int_to_ptr.vmem [resolvable:$true] %s220
          %226 = dma.hbm_to_vmem [thread:$0]  %s219, 16384, %s221, [#allocation6], 256, 256, 16
        $region16: #{tpu_custom_call.1} parent=11 // pred_fallthru
          _
        // Predicated region
        $region17: #{tpu_custom_call.1} parent=11 // pred_check
          %p227 = pneg %p94
        $region18: #{tpu_custom_call.1} parent=11 // pred_check_branch
          %229 = sbr.rel (%p227) target = $region20
        $region19: #{tpu_custom_call.1} parent=11 // pred_region
          %231 = vsyncadd [#allocation6], 0
          %s233 = sshll.u32 %s2, 4
          %s234 = int_to_ptr.hbm [resolvable:$true] %s233
          %s235 = sshll.u32 [#allocation7], 4
          %s236 = int_to_ptr.vmem [resolvable:$true] %s235
          %238 = dma.hbm_to_vmem [thread:$0]  %s234, 32, %s236, [#allocation6]
        $region20: #{tpu_custom_call.1} parent=11 // pred_fallthru
          _
      $region12: #{tpu_custom_call.1} parent=5 // pred_fallthru
        _
      %p239 = scmp.lt.s32.totalorder %s26, 4
      // Predicated region
      $region21: #{tpu_custom_call.1} parent=5 // pred_check
        %p240 = pneg %p239
      $region22: #{tpu_custom_call.1} parent=5 // pred_check_branch
        %242 = sbr.rel (%p240) target = $region24
      $region23: #{tpu_custom_call.1} parent=5 // pred_region
        // Predicated region
        $region25: #{tpu_custom_call.1} parent=23 // pred_check
          %p243 = pneg %p46
        $region26: #{tpu_custom_call.1} parent=23 // pred_check_branch
          %245 = sbr.rel (%p243) target = $region28
        $region27: #{tpu_custom_call.1} parent=23 // pred_region
          %s246 = sand.u32 %s36, 1
          %s247 = scalar_lea.sflag [#allocation3], %s246
          %s248 = sand.u32 %s36, 1
          %s249 = smul.addr %s248, 128
          %s250 = scalar_lea.vmem [#allocation2], %s249
          %s251 = smul.u32 4, %s26
          %253 = vsyncadd %s247, 0
          %s254 = smul.addr %s251, 4
          %s255 = smul.addr %s254, 8
          %s256 = scalar_lea.hbm %s0, %s255
          %s257 = sshll.u32 %s256, 4
          %s258 = int_to_ptr.hbm [resolvable:$true] %s257
          %s259 = sshll.u32 %s250, 4
          %s260 = int_to_ptr.vmem [resolvable:$true] %s259
          %265 = dma.hbm_to_vmem [thread:$0]  %s258, 2048, %s260, %s247, 512, 512, 32
        $region28: #{tpu_custom_call.1} parent=23 // pred_fallthru
          _
      $region24: #{tpu_custom_call.1} parent=5 // pred_fallthru
        _
      %p266 = scmp.le.s32.totalorder 1, %s26
      %p267 = scmp.lt.s32.totalorder %s26, 5
      %p268 = pnand %p266, %p267
      %p269 = pneg %p268
      // Predicated region
      $region29: #{tpu_custom_call.1} parent=5 // pred_check
        _
      $region30: #{tpu_custom_call.1} parent=5 // pred_check_branch
        %271 = sbr.rel (%p268) target = $region32
      $region31: #{tpu_custom_call.1} parent=5 // pred_region
        %s272 = ssub.s32 %s26, 1
        %s273 = sand.u32 %s39, 1
        %s274 = scalar_lea.sflag [#allocation3], %s273
        %s275 = sand.u32 %s39, 1
        %s276 = smul.addr %s275, 128
        %s277 = scalar_lea.vmem [#allocation2], %s276
        // Predicated region
        $region33: #{tpu_custom_call.1} parent=31 // pred_check
          %p278 = pneg %p52
        $region34: #{tpu_custom_call.1} parent=31 // pred_check_branch
          %280 = sbr.rel (%p278) target = $region36
        $region35: #{tpu_custom_call.1} parent=31 // pred_region
          %282 = dma.done %s274, 2048
        $region36: #{tpu_custom_call.1} parent=31 // pred_fallthru
          _
        // Predicated region
        $region37: #{tpu_custom_call.1} parent=31 // pred_check
          %p283 = pneg %p73
        $region38: #{tpu_custom_call.1} parent=31 // pred_check_branch
          %285 = sbr.rel (%p283) target = $region40
        $region39: #{tpu_custom_call.1} parent=31 // pred_region
          %287 = dma.done [#allocation6], 16384
        $region40: #{tpu_custom_call.1} parent=31 // pred_fallthru
          _
        // Predicated region
        $region41: #{tpu_custom_call.1} parent=31 // pred_check
          %p288 = pneg %p94
        $region42: #{tpu_custom_call.1} parent=31 // pred_check_branch
          %290 = sbr.rel (%p288) target = $region44
        $region43: #{tpu_custom_call.1} parent=31 // pred_region
          %292 = dma.done [#allocation6], 32
        $region44: #{tpu_custom_call.1} parent=31 // pred_fallthru
          _
        %s293 = sand.u32 %s39, 1
        %s294 = scalar_lea.sflag [#allocation3], %s293
        %s295 = sand.u32 %s39, 1
        %s296 = smul.addr %s295, 128
        %s297 = scalar_lea.vmem [#allocation2], %s296
        %p298 = pneg %p52
        %p299 = pneg %p49
        %p300 = pneg %p73
        %p301 = pneg %p70
        %p302 = pneg %p94
        %p303 = pneg %p91
        %p304 = pneg %p120
        %p305 = pneg %p117
        %s306 = sand.u32 %s107, 1
        %s307 = scalar_lea.sflag [#allocation4], %s306
        %s308 = sand.u32 %s107, 1
        %s309 = smul.addr %s308, 64
        %s310 = scalar_lea.vmem [#allocation8], %s309
        %p311 = pneg %p146
        %p312 = pneg %p143
        %s313 = sand.u32 %s31, 1
        %s314 = scalar_lea.sflag [#allocation10], %s313
        %s315 = sand.u32 %s133, 1
        %s316 = smul.addr %s315, 256
        %s317 = scalar_lea.vmem [#allocation9], %s316
        %p318 = pneg %p172
        %p319 = pneg %p169
        %s320 = sand.u32 %s31, 1
        %s321 = scalar_lea.sflag [#allocation10], %s320
        %s322 = sand.u32 %s159, 1
        %s323 = smul.addr %s322, 1024
        %s324 = scalar_lea.vmem [#allocation11], %s323
        %p325 = pneg %p198
        %p326 = pneg %p195
        %s327 = sand.u32 %s185, 1
        %s328 = scalar_lea.sflag [#allocation13], %s327
        %s329 = sand.u32 %s185, 1
        %s330 = smul.addr %s329, 4096
        %s331 = scalar_lea.vmem [#allocation12], %s330
        %s332 = smul.u32 4, %s31
        %s333 = smul.u32 4, %s31
        %s334 = smul.u32 4, %s31
        %s335 = smul.u32 4, %s31
        %s336 = smul.u32 4, %s31
        %v337 = vld [vmem:[%s277] sm:$0xff]
        %v338 = vld [vmem:[%s277 + $0x8] sm:$0xff]
        %v339 = vld [vmem:[%s277 + $0x10] sm:$0xff]
        %v340 = vld [vmem:[%s277 + $0x18] sm:$0xff]
        %v341 = vld [vmem:[%s277 + $0x20] sm:$0xff]
        %v342 = vld [vmem:[%s277 + $0x28] sm:$0xff]
        %v343 = vld [vmem:[%s277 + $0x30] sm:$0xff]
        %v344 = vld [vmem:[%s277 + $0x38] sm:$0xff]
        %v345 = vld [vmem:[%s277 + $0x40] sm:$0xff]
        %v346 = vld [vmem:[%s277 + $0x48] sm:$0xff]
        %v347 = vld [vmem:[%s277 + $0x50] sm:$0xff]
        %v348 = vld [vmem:[%s277 + $0x58] sm:$0xff]
        %v349 = vld [vmem:[%s277 + $0x60] sm:$0xff]
        %v350 = vld [vmem:[%s277 + $0x68] sm:$0xff]
        %v351 = vld [vmem:[%s277 + $0x70] sm:$0xff]
        %v352 = vld [vmem:[%s277 + $0x78] sm:$0xff]
        %v353 = vld [vmem:[#allocation5] sm:$0xff]
        %v354 = vld [vmem:[#allocation5 + $0x8] sm:$0xff]
        %v355 = vld [vmem:[#allocation5 + $0x10] sm:$0xff]
        %v356 = vld [vmem:[#allocation5 + $0x18] sm:$0xff]
        %v357 = vld [vmem:[#allocation5 + $0x20] sm:$0xff]
        %v358 = vld [vmem:[#allocation5 + $0x28] sm:$0xff]
        %v359 = vld [vmem:[#allocation5 + $0x30] sm:$0xff]
        %v360 = vld [vmem:[#allocation5 + $0x38] sm:$0xff]
        %v361 = vld [vmem:[#allocation5 + $0x40] sm:$0xff]
        %v362 = vld [vmem:[#allocation5 + $0x48] sm:$0xff]
        %v363 = vld [vmem:[#allocation5 + $0x50] sm:$0xff]
        %v364 = vld [vmem:[#allocation5 + $0x58] sm:$0xff]
        %v365 = vld [vmem:[#allocation5 + $0x60] sm:$0xff]
        %v366 = vld [vmem:[#allocation5 + $0x68] sm:$0xff]
        %v367 = vld [vmem:[#allocation5 + $0x70] sm:$0xff]
        %v368 = vld [vmem:[#allocation5 + $0x78] sm:$0xff]
        %v369 = vld [vmem:[#allocation5 + $0x80] sm:$0xff]
        %v370 = vld [vmem:[#allocation5 + $0x88] sm:$0xff]
        %v371 = vld [vmem:[#allocation5 + $0x90] sm:$0xff]
        %v372 = vld [vmem:[#allocation5 + $0x98] sm:$0xff]
        %v373 = vld [vmem:[#allocation5 + $0xa0] sm:$0xff]
        %v374 = vld [vmem:[#allocation5 + $0xa8] sm:$0xff]
        %v375 = vld [vmem:[#allocation5 + $0xb0] sm:$0xff]
        %v376 = vld [vmem:[#allocation5 + $0xb8] sm:$0xff]
        %v377 = vld [vmem:[#allocation5 + $0xc0] sm:$0xff]
        %v378 = vld [vmem:[#allocation5 + $0xc8] sm:$0xff]
        %v379 = vld [vmem:[#allocation5 + $0xd0] sm:$0xff]
        %v380 = vld [vmem:[#allocation5 + $0xd8] sm:$0xff]
        %v381 = vld [vmem:[#allocation5 + $0xe0] sm:$0xff]
        %v382 = vld [vmem:[#allocation5 + $0xe8] sm:$0xff]
        %v383 = vld [vmem:[#allocation5 + $0xf0] sm:$0xff]
        %v384 = vld [vmem:[#allocation5 + $0xf8] sm:$0xff]
        %v385 = vld [vmem:[#allocation5 + $0x100] sm:$0xff]
        %v386 = vld [vmem:[#allocation5 + $0x108] sm:$0xff]
        %v387 = vld [vmem:[#allocation5 + $0x110] sm:$0xff]
        %v388 = vld [vmem:[#allocation5 + $0x118] sm:$0xff]
        %v389 = vld [vmem:[#allocation5 + $0x120] sm:$0xff]
        %v390 = vld [vmem:[#allocation5 + $0x128] sm:$0xff]
        %v391 = vld [vmem:[#allocation5 + $0x130] sm:$0xff]
        %v392 = vld [vmem:[#allocation5 + $0x138] sm:$0xff]
        %v393 = vld [vmem:[#allocation5 + $0x140] sm:$0xff]
        %v394 = vld [vmem:[#allocation5 + $0x148] sm:$0xff]
        %v395 = vld [vmem:[#allocation5 + $0x150] sm:$0xff]
        %v396 = vld [vmem:[#allocation5 + $0x158] sm:$0xff]
        %v397 = vld [vmem:[#allocation5 + $0x160] sm:$0xff]
        %v398 = vld [vmem:[#allocation5 + $0x168] sm:$0xff]
        %v399 = vld [vmem:[#allocation5 + $0x170] sm:$0xff]
        %v400 = vld [vmem:[#allocation5 + $0x178] sm:$0xff]
        %v401 = vld [vmem:[#allocation5 + $0x180] sm:$0xff]
        %v402 = vld [vmem:[#allocation5 + $0x188] sm:$0xff]
        %v403 = vld [vmem:[#allocation5 + $0x190] sm:$0xff]
        %v404 = vld [vmem:[#allocation5 + $0x198] sm:$0xff]
        %v405 = vld [vmem:[#allocation5 + $0x1a0] sm:$0xff]
        %v406 = vld [vmem:[#allocation5 + $0x1a8] sm:$0xff]
        %v407 = vld [vmem:[#allocation5 + $0x1b0] sm:$0xff]
        %v408 = vld [vmem:[#allocation5 + $0x1b8] sm:$0xff]
        %v409 = vld [vmem:[#allocation5 + $0x1c0] sm:$0xff]
        %v410 = vld [vmem:[#allocation5 + $0x1c8] sm:$0xff]
        %v411 = vld [vmem:[#allocation5 + $0x1d0] sm:$0xff]
        %v412 = vld [vmem:[#allocation5 + $0x1d8] sm:$0xff]
        %v413 = vld [vmem:[#allocation5 + $0x1e0] sm:$0xff]
        %v414 = vld [vmem:[#allocation5 + $0x1e8] sm:$0xff]
        %v415 = vld [vmem:[#allocation5 + $0x1f0] sm:$0xff]
        %v416 = vld [vmem:[#allocation5 + $0x1f8] sm:$0xff]
        %v417 = vld [vmem:[#allocation5 + $0x200] sm:$0xff]
        %v418 = vld [vmem:[#allocation5 + $0x208] sm:$0xff]
        %v419 = vld [vmem:[#allocation5 + $0x210] sm:$0xff]
        %v420 = vld [vmem:[#allocation5 + $0x218] sm:$0xff]
        %v421 = vld [vmem:[#allocation5 + $0x220] sm:$0xff]
        %v422 = vld [vmem:[#allocation5 + $0x228] sm:$0xff]
        %v423 = vld [vmem:[#allocation5 + $0x230] sm:$0xff]
        %v424 = vld [vmem:[#allocation5 + $0x238] sm:$0xff]
        %v425 = vld [vmem:[#allocation5 + $0x240] sm:$0xff]
        %v426 = vld [vmem:[#allocation5 + $0x248] sm:$0xff]
        %v427 = vld [vmem:[#allocation5 + $0x250] sm:$0xff]
        %v428 = vld [vmem:[#allocation5 + $0x258] sm:$0xff]
        %v429 = vld [vmem:[#allocation5 + $0x260] sm:$0xff]
        %v430 = vld [vmem:[#allocation5 + $0x268] sm:$0xff]
        %v431 = vld [vmem:[#allocation5 + $0x270] sm:$0xff]
        %v432 = vld [vmem:[#allocation5 + $0x278] sm:$0xff]
        %v433 = vld [vmem:[#allocation5 + $0x280] sm:$0xff]
        %v434 = vld [vmem:[#allocation5 + $0x288] sm:$0xff]
        %v435 = vld [vmem:[#allocation5 + $0x290] sm:$0xff]
        %v436 = vld [vmem:[#allocation5 + $0x298] sm:$0xff]
        %v437 = vld [vmem:[#allocation5 + $0x2a0] sm:$0xff]
        %v438 = vld [vmem:[#allocation5 + $0x2a8] sm:$0xff]
        %v439 = vld [vmem:[#allocation5 + $0x2b0] sm:$0xff]
        %v440 = vld [vmem:[#allocation5 + $0x2b8] sm:$0xff]
        %v441 = vld [vmem:[#allocation5 + $0x2c0] sm:$0xff]
        %v442 = vld [vmem:[#allocation5 + $0x2c8] sm:$0xff]
        %v443 = vld [vmem:[#allocation5 + $0x2d0] sm:$0xff]
        %v444 = vld [vmem:[#allocation5 + $0x2d8] sm:$0xff]
        %v445 = vld [vmem:[#allocation5 + $0x2e0] sm:$0xff]
        %v446 = vld [vmem:[#allocation5 + $0x2e8] sm:$0xff]
        %v447 = vld [vmem:[#allocation5 + $0x2f0] sm:$0xff]
        %v448 = vld [vmem:[#allocation5 + $0x2f8] sm:$0xff]
        %v449 = vld [vmem:[#allocation5 + $0x300] sm:$0xff]
        %v450 = vld [vmem:[#allocation5 + $0x308] sm:$0xff]
        %v451 = vld [vmem:[#allocation5 + $0x310] sm:$0xff]
        %v452 = vld [vmem:[#allocation5 + $0x318] sm:$0xff]
        %v453 = vld [vmem:[#allocation5 + $0x320] sm:$0xff]
        %v454 = vld [vmem:[#allocation5 + $0x328] sm:$0xff]
        %v455 = vld [vmem:[#allocation5 + $0x330] sm:$0xff]
        %v456 = vld [vmem:[#allocation5 + $0x338] sm:$0xff]
        %v457 = vld [vmem:[#allocation5 + $0x340] sm:$0xff]
        %v458 = vld [vmem:[#allocation5 + $0x348] sm:$0xff]
        %v459 = vld [vmem:[#allocation5 + $0x350] sm:$0xff]
        %v460 = vld [vmem:[#allocation5 + $0x358] sm:$0xff]
        %v461 = vld [vmem:[#allocation5 + $0x360] sm:$0xff]
        %v462 = vld [vmem:[#allocation5 + $0x368] sm:$0xff]
        %v463 = vld [vmem:[#allocation5 + $0x370] sm:$0xff]
        %v464 = vld [vmem:[#allocation5 + $0x378] sm:$0xff]
        %v465 = vld [vmem:[#allocation5 + $0x380] sm:$0xff]
        %v466 = vld [vmem:[#allocation5 + $0x388] sm:$0xff]
        %v467 = vld [vmem:[#allocation5 + $0x390] sm:$0xff]
        %v468 = vld [vmem:[#allocation5 + $0x398] sm:$0xff]
        %v469 = vld [vmem:[#allocation5 + $0x3a0] sm:$0xff]
        %v470 = vld [vmem:[#allocation5 + $0x3a8] sm:$0xff]
        %v471 = vld [vmem:[#allocation5 + $0x3b0] sm:$0xff]
        %v472 = vld [vmem:[#allocation5 + $0x3b8] sm:$0xff]
        %v473 = vld [vmem:[#allocation5 + $0x3c0] sm:$0xff]
        %v474 = vld [vmem:[#allocation5 + $0x3c8] sm:$0xff]
        %v475 = vld [vmem:[#allocation5 + $0x3d0] sm:$0xff]
        %v476 = vld [vmem:[#allocation5 + $0x3d8] sm:$0xff]
        %v477 = vld [vmem:[#allocation5 + $0x3e0] sm:$0xff]
        %v478 = vld [vmem:[#allocation5 + $0x3e8] sm:$0xff]
        %v479 = vld [vmem:[#allocation5 + $0x3f0] sm:$0xff]
        %v480 = vld [vmem:[#allocation5 + $0x3f8] sm:$0xff]
        %v481 = vld [vmem:[#allocation7] sm:$0x3]
        %v483 = vperm.slane %v481, 0
        %v484 = vperm.slane %v481, 1
        %487 = vmatpush.msra.mxu0 %v383
        %488 = vmatpush.msra.mxu0 %v381
        %489 = vmatpush.msra.mxu0 %v379
        %490 = vmatpush.msra.mxu0 %v377
        %491 = vmatpush.msra.mxu0 %v375
        %492 = vmatpush.msra.mxu0 %v373
        %493 = vmatpush.msra.mxu0 %v371
        %494 = vmatpush.msra.mxu0 %v369
        %495 = vmatpush.msra.mxu0 %v367
        %496 = vmatpush.msra.mxu0 %v365
        %497 = vmatpush.msra.mxu0 %v363
        %498 = vmatpush.msra.mxu0 %v361
        %499 = vmatpush.msra.mxu0 %v359
        %500 = vmatpush.msra.mxu0 %v357
        %501 = vmatpush.msra.mxu0 %v355
        %502 = vmatpush.msra.mxu0 %v353
        %503 = vmatmul.f32.gmra.mxu0 %v337
        %v504 = vpop.f32.mrf.mxu0
        %v505 = vadd.f32 %v483, %v504
        %506 = vmatmul.f32.gmra.mxu0 %v341
        %v507 = vpop.f32.mrf.mxu0
        %v508 = vadd.f32 %v483, %v507
        %509 = vmatmul.f32.gmra.mxu0 %v345
        %v510 = vpop.f32.mrf.mxu0
        %v511 = vadd.f32 %v483, %v510
        %512 = vmatmul.f32.gmra.mxu0 %v349
        %v513 = vpop.f32.mrf.mxu0
        %v514 = vadd.f32 %v483, %v513
        %515 = vdwg.mxu0
        %516 = vmatpush.msra.mxu0 %v415
        %517 = vmatpush.msra.mxu0 %v413
        %518 = vmatpush.msra.mxu0 %v411
        %519 = vmatpush.msra.mxu0 %v409
        %520 = vmatpush.msra.mxu0 %v407
        %521 = vmatpush.msra.mxu0 %v405
        %522 = vmatpush.msra.mxu0 %v403
        %523 = vmatpush.msra.mxu0 %v401
        %524 = vmatpush.msra.mxu0 %v399
        %525 = vmatpush.msra.mxu0 %v397
        %526 = vmatpush.msra.mxu0 %v395
        %527 = vmatpush.msra.mxu0 %v393
        %528 = vmatpush.msra.mxu0 %v391
        %529 = vmatpush.msra.mxu0 %v389
        %530 = vmatpush.msra.mxu0 %v387
        %531 = vmatpush.msra.mxu0 %v385
        %532 = vmatmul.f32.gmra.mxu0 %v338
        %v533 = vpop.f32.mrf.mxu0
        %v534 = vadd.f32 %v505, %v533
        %535 = vmatmul.f32.gmra.mxu0 %v342
        %v536 = vpop.f32.mrf.mxu0
        %v537 = vadd.f32 %v508, %v536
        %538 = vmatmul.f32.gmra.mxu0 %v346
        %v539 = vpop.f32.mrf.mxu0
        %v540 = vadd.f32 %v511, %v539
        %541 = vmatmul.f32.gmra.mxu0 %v350
        %v542 = vpop.f32.mrf.mxu0
        %v543 = vadd.f32 %v514, %v542
        %544 = vdwg.mxu0
        %545 = vmatpush.msra.mxu0 %v447
        %546 = vmatpush.msra.mxu0 %v445
        %547 = vmatpush.msra.mxu0 %v443
        %548 = vmatpush.msra.mxu0 %v441
        %549 = vmatpush.msra.mxu0 %v439
        %550 = vmatpush.msra.mxu0 %v437
        %551 = vmatpush.msra.mxu0 %v435
        %552 = vmatpush.msra.mxu0 %v433
        %553 = vmatpush.msra.mxu0 %v431
        %554 = vmatpush.msra.mxu0 %v429
        %555 = vmatpush.msra.mxu0 %v427
        %556 = vmatpush.msra.mxu0 %v425
        %557 = vmatpush.msra.mxu0 %v423
        %558 = vmatpush.msra.mxu0 %v421
        %559 = vmatpush.msra.mxu0 %v419
        %560 = vmatpush.msra.mxu0 %v417
        %561 = vmatmul.f32.gmra.mxu0 %v339
        %v562 = vpop.f32.mrf.mxu0
        %v563 = vadd.f32 %v534, %v562
        %564 = vmatmul.f32.gmra.mxu0 %v343
        %v565 = vpop.f32.mrf.mxu0
        %v566 = vadd.f32 %v537, %v565
        %567 = vmatmul.f32.gmra.mxu0 %v347
        %v568 = vpop.f32.mrf.mxu0
        %v569 = vadd.f32 %v540, %v568
        %570 = vmatmul.f32.gmra.mxu0 %v351
        %v571 = vpop.f32.mrf.mxu0
        %v572 = vadd.f32 %v543, %v571
        %573 = vdwg.mxu0
        %574 = vmatpush.msra.mxu0 %v479
        %575 = vmatpush.msra.mxu0 %v477
        %576 = vmatpush.msra.mxu0 %v475
        %577 = vmatpush.msra.mxu0 %v473
        %578 = vmatpush.msra.mxu0 %v471
        %579 = vmatpush.msra.mxu0 %v469
        %580 = vmatpush.msra.mxu0 %v467
        %581 = vmatpush.msra.mxu0 %v465
        %582 = vmatpush.msra.mxu0 %v463
        %583 = vmatpush.msra.mxu0 %v461
        %584 = vmatpush.msra.mxu0 %v459
        %585 = vmatpush.msra.mxu0 %v457
        %586 = vmatpush.msra.mxu0 %v455
        %587 = vmatpush.msra.mxu0 %v453
        %588 = vmatpush.msra.mxu0 %v451
        %589 = vmatpush.msra.mxu0 %v449
        %590 = vmatmul.f32.gmra.mxu0 %v340
        %v591 = vpop.f32.mrf.mxu0
        %v592 = vadd.f32 %v563, %v591
        %593 = vmatmul.f32.gmra.mxu0 %v344
        %v594 = vpop.f32.mrf.mxu0
        %v595 = vadd.f32 %v566, %v594
        %596 = vmatmul.f32.gmra.mxu0 %v348
        %v597 = vpop.f32.mrf.mxu0
        %v598 = vadd.f32 %v569, %v597
        %599 = vmatmul.f32.gmra.mxu0 %v352
        %v600 = vpop.f32.mrf.mxu0
        %v601 = vadd.f32 %v572, %v600
        %602 = vdwg.mxu0
        %603 = vmatpush.msra.mxu0 %v384
        %604 = vmatpush.msra.mxu0 %v382
        %605 = vmatpush.msra.mxu0 %v380
        %606 = vmatpush.msra.mxu0 %v378
        %607 = vmatpush.msra.mxu0 %v376
        %608 = vmatpush.msra.mxu0 %v374
        %609 = vmatpush.msra.mxu0 %v372
        %610 = vmatpush.msra.mxu0 %v370
        %611 = vmatpush.msra.mxu0 %v368
        %612 = vmatpush.msra.mxu0 %v366
        %613 = vmatpush.msra.mxu0 %v364
        %614 = vmatpush.msra.mxu0 %v362
        %615 = vmatpush.msra.mxu0 %v360
        %616 = vmatpush.msra.mxu0 %v358
        %617 = vmatpush.msra.mxu0 %v356
        %618 = vmatpush.msra.mxu0 %v354
        %619 = vmatmul.f32.gmra.mxu0 %v337
        %v620 = vpop.f32.mrf.mxu0
        %v621 = vadd.f32 %v484, %v620
        %622 = vmatmul.f32.gmra.mxu0 %v341
        %v623 = vpop.f32.mrf.mxu0
        %v624 = vadd.f32 %v484, %v623
        %625 = vmatmul.f32.gmra.mxu0 %v345
        %v626 = vpop.f32.mrf.mxu0
        %v627 = vadd.f32 %v484, %v626
        %628 = vmatmul.f32.gmra.mxu0 %v349
        %v629 = vpop.f32.mrf.mxu0
        %v630 = vadd.f32 %v484, %v629
        %631 = vdwg.mxu0
        %632 = vmatpush.msra.mxu0 %v416
        %633 = vmatpush.msra.mxu0 %v414
        %634 = vmatpush.msra.mxu0 %v412
        %635 = vmatpush.msra.mxu0 %v410
        %636 = vmatpush.msra.mxu0 %v408
        %637 = vmatpush.msra.mxu0 %v406
        %638 = vmatpush.msra.mxu0 %v404
        %639 = vmatpush.msra.mxu0 %v402
        %640 = vmatpush.msra.mxu0 %v400
        %641 = vmatpush.msra.mxu0 %v398
        %642 = vmatpush.msra.mxu0 %v396
        %643 = vmatpush.msra.mxu0 %v394
        %644 = vmatpush.msra.mxu0 %v392
        %645 = vmatpush.msra.mxu0 %v390
        %646 = vmatpush.msra.mxu0 %v388
        %647 = vmatpush.msra.mxu0 %v386
        %648 = vmatmul.f32.gmra.mxu0 %v338
        %v649 = vpop.f32.mrf.mxu0
        %v650 = vadd.f32 %v621, %v649
        %651 = vmatmul.f32.gmra.mxu0 %v342
        %v652 = vpop.f32.mrf.mxu0
        %v653 = vadd.f32 %v624, %v652
        %654 = vmatmul.f32.gmra.mxu0 %v346
        %v655 = vpop.f32.mrf.mxu0
        %v656 = vadd.f32 %v627, %v655
        %657 = vmatmul.f32.gmra.mxu0 %v350
        %v658 = vpop.f32.mrf.mxu0
        %v659 = vadd.f32 %v630, %v658
        %660 = vdwg.mxu0
        %661 = vmatpush.msra.mxu0 %v448
        %662 = vmatpush.msra.mxu0 %v446
        %663 = vmatpush.msra.mxu0 %v444
        %664 = vmatpush.msra.mxu0 %v442
        %665 = vmatpush.msra.mxu0 %v440
        %666 = vmatpush.msra.mxu0 %v438
        %667 = vmatpush.msra.mxu0 %v436
        %668 = vmatpush.msra.mxu0 %v434
        %669 = vmatpush.msra.mxu0 %v432
        %670 = vmatpush.msra.mxu0 %v430
        %671 = vmatpush.msra.mxu0 %v428
        %672 = vmatpush.msra.mxu0 %v426
        %673 = vmatpush.msra.mxu0 %v424
        %674 = vmatpush.msra.mxu0 %v422
        %675 = vmatpush.msra.mxu0 %v420
        %676 = vmatpush.msra.mxu0 %v418
        %677 = vmatmul.f32.gmra.mxu0 %v339
        %v678 = vpop.f32.mrf.mxu0
        %v679 = vadd.f32 %v650, %v678
        %680 = vmatmul.f32.gmra.mxu0 %v343
        %v681 = vpop.f32.mrf.mxu0
        %v682 = vadd.f32 %v653, %v681
        %683 = vmatmul.f32.gmra.mxu0 %v347
        %v684 = vpop.f32.mrf.mxu0
        %v685 = vadd.f32 %v656, %v684
        %686 = vmatmul.f32.gmra.mxu0 %v351
        %v687 = vpop.f32.mrf.mxu0
        %v688 = vadd.f32 %v659, %v687
        %689 = vdwg.mxu0
        %690 = vmatpush.msra.mxu0 %v480
        %691 = vmatpush.msra.mxu0 %v478
        %692 = vmatpush.msra.mxu0 %v476
        %693 = vmatpush.msra.mxu0 %v474
        %694 = vmatpush.msra.mxu0 %v472
        %695 = vmatpush.msra.mxu0 %v470
        %696 = vmatpush.msra.mxu0 %v468
        %697 = vmatpush.msra.mxu0 %v466
        %698 = vmatpush.msra.mxu0 %v464
        %699 = vmatpush.msra.mxu0 %v462
        %700 = vmatpush.msra.mxu0 %v460
        %701 = vmatpush.msra.mxu0 %v458
        %702 = vmatpush.msra.mxu0 %v456
        %703 = vmatpush.msra.mxu0 %v454
        %704 = vmatpush.msra.mxu0 %v452
        %705 = vmatpush.msra.mxu0 %v450
        %706 = vmatmul.f32.gmra.mxu0 %v340
        %v707 = vpop.f32.mrf.mxu0
        %v708 = vadd.f32 %v679, %v707
        %709 = vmatmul.f32.gmra.mxu0 %v344
        %v710 = vpop.f32.mrf.mxu0
        %v711 = vadd.f32 %v682, %v710
        %712 = vmatmul.f32.gmra.mxu0 %v348
        %v713 = vpop.f32.mrf.mxu0
        %v714 = vadd.f32 %v685, %v713
        %715 = vmatmul.f32.gmra.mxu0 %v352
        %v716 = vpop.f32.mrf.mxu0
        %v717 = vadd.f32 %v688, %v716
        %718 = vdwg.mxu0
        %719 = vst [vmem:[%s310] sm:$0xff] %v592
        %720 = vst [vmem:[%s310 + $0x8] sm:$0xff] %v708
        %721 = vst [vmem:[%s310 + $0x10] sm:$0xff] %v595
        %722 = vst [vmem:[%s310 + $0x18] sm:$0xff] %v711
        %723 = vst [vmem:[%s310 + $0x20] sm:$0xff] %v598
        %724 = vst [vmem:[%s310 + $0x28] sm:$0xff] %v714
        %725 = vst [vmem:[%s310 + $0x30] sm:$0xff] %v601
        %726 = vst [vmem:[%s310 + $0x38] sm:$0xff] %v717
        %727 = vst [vmem:[%s317] sm:$0xff] %v592
        %728 = vst [vmem:[%s317 + $0x8] sm:$0xff] %v708
        %729 = vst [vmem:[%s317 + $0x40] sm:$0xff] %v595
        %730 = vst [vmem:[%s317 + $0x48] sm:$0xff] %v711
        %731 = vst [vmem:[%s317 + $0x80] sm:$0xff] %v598
        %732 = vst [vmem:[%s317 + $0x88] sm:$0xff] %v714
        %733 = vst [vmem:[%s317 + $0xc0] sm:$0xff] %v601
        %734 = vst [vmem:[%s317 + $0xc8] sm:$0xff] %v717
        %735 = vst [vmem:[%s317 + $0x10] sm:$0xff] %v592
        %736 = vst [vmem:[%s317 + $0x18] sm:$0xff] %v708
        %737 = vst [vmem:[%s317 + $0x50] sm:$0xff] %v595
        %738 = vst [vmem:[%s317 + $0x58] sm:$0xff] %v711
        %739 = vst [vmem:[%s317 + $0x90] sm:$0xff] %v598
        %740 = vst [vmem:[%s317 + $0x98] sm:$0xff] %v714
        %741 = vst [vmem:[%s317 + $0xd0] sm:$0xff] %v601
        %742 = vst [vmem:[%s317 + $0xd8] sm:$0xff] %v717
        %s743 = scalar_lea.vmem %s317, 32 [#allocation9]
        %744 = vst [vmem:[%s743] sm:$0xff] %v592
        %745 = vst [vmem:[%s743 + $0x8] sm:$0xff] %v708
        %746 = vst [vmem:[%s743 + $0x40] sm:$0xff] %v595
        %747 = vst [vmem:[%s743 + $0x48] sm:$0xff] %v711
        %748 = vst [vmem:[%s743 + $0x80] sm:$0xff] %v598
        %749 = vst [vmem:[%s743 + $0x88] sm:$0xff] %v714
        %750 = vst [vmem:[%s743 + $0xc0] sm:$0xff] %v601
        %751 = vst [vmem:[%s743 + $0xc8] sm:$0xff] %v717
        %752 = vst [vmem:[%s743 + $0x10] sm:$0xff] %v592
        %753 = vst [vmem:[%s743 + $0x18] sm:$0xff] %v708
        %754 = vst [vmem:[%s743 + $0x50] sm:$0xff] %v595
        %755 = vst [vmem:[%s743 + $0x58] sm:$0xff] %v711
        %756 = vst [vmem:[%s743 + $0x90] sm:$0xff] %v598
        %757 = vst [vmem:[%s743 + $0x98] sm:$0xff] %v714
        %758 = vst [vmem:[%s743 + $0xd0] sm:$0xff] %v601
        %759 = vst [vmem:[%s743 + $0xd8] sm:$0xff] %v717
        %760 = vst [vmem:[%s324] sm:$0xff] %v592
        %761 = vst [vmem:[%s324 + $0x8] sm:$0xff] %v708
        %762 = vst [vmem:[%s324 + $0x100] sm:$0xff] %v595
        %763 = vst [vmem:[%s324 + $0x108] sm:$0xff] %v711
        %764 = vst [vmem:[%s324 + $0x200] sm:$0xff] %v598
        %765 = vst [vmem:[%s324 + $0x208] sm:$0xff] %v714
        %766 = vst [vmem:[%s324 + $0x300] sm:$0xff] %v601
        %767 = vst [vmem:[%s324 + $0x308] sm:$0xff] %v717
        %768 = vst [vmem:[%s324 + $0x10] sm:$0xff] %v592
        %769 = vst [vmem:[%s324 + $0x18] sm:$0xff] %v708
        %770 = vst [vmem:[%s324 + $0x110] sm:$0xff] %v595
        %771 = vst [vmem:[%s324 + $0x118] sm:$0xff] %v711
        %772 = vst [vmem:[%s324 + $0x210] sm:$0xff] %v598
        %773 = vst [vmem:[%s324 + $0x218] sm:$0xff] %v714
        %774 = vst [vmem:[%s324 + $0x310] sm:$0xff] %v601
        %775 = vst [vmem:[%s324 + $0x318] sm:$0xff] %v717
        %776 = vst [vmem:[%s324 + $0x20] sm:$0xff] %v592
        %777 = vst [vmem:[%s324 + $0x28] sm:$0xff] %v708
        %778 = vst [vmem:[%s324 + $0x120] sm:$0xff] %v595
        %779 = vst [vmem:[%s324 + $0x128] sm:$0xff] %v711
        %780 = vst [vmem:[%s324 + $0x220] sm:$0xff] %v598
        %781 = vst [vmem:[%s324 + $0x228] sm:$0xff] %v714
        %782 = vst [vmem:[%s324 + $0x320] sm:$0xff] %v601
        %783 = vst [vmem:[%s324 + $0x328] sm:$0xff] %v717
        %784 = vst [vmem:[%s324 + $0x30] sm:$0xff] %v592
        %785 = vst [vmem:[%s324 + $0x38] sm:$0xff] %v708
        %786 = vst [vmem:[%s324 + $0x130] sm:$0xff] %v595
        %787 = vst [vmem:[%s324 + $0x138] sm:$0xff] %v711
        %788 = vst [vmem:[%s324 + $0x230] sm:$0xff] %v598
        %789 = vst [vmem:[%s324 + $0x238] sm:$0xff] %v714
        %790 = vst [vmem:[%s324 + $0x330] sm:$0xff] %v601
        %791 = vst [vmem:[%s324 + $0x338] sm:$0xff] %v717
        %s792 = scalar_lea.vmem %s324, 64 [#allocation11]
        %793 = vst [vmem:[%s792] sm:$0xff] %v592
        %794 = vst [vmem:[%s792 + $0x8] sm:$0xff] %v708
        %795 = vst [vmem:[%s792 + $0x100] sm:$0xff] %v595
        %796 = vst [vmem:[%s792 + $0x108] sm:$0xff] %v711
        %797 = vst [vmem:[%s792 + $0x200] sm:$0xff] %v598
        %798 = vst [vmem:[%s792 + $0x208] sm:$0xff] %v714
        %799 = vst [vmem:[%s792 + $0x300] sm:$0xff] %v601
        %800 = vst [vmem:[%s792 + $0x308] sm:$0xff] %v717
        %801 = vst [vmem:[%s792 + $0x10] sm:$0xff] %v592
        %802 = vst [vmem:[%s792 + $0x18] sm:$0xff] %v708
        %803 = vst [vmem:[%s792 + $0x110] sm:$0xff] %v595
        %804 = vst [vmem:[%s792 + $0x118] sm:$0xff] %v711
        %805 = vst [vmem:[%s792 + $0x210] sm:$0xff] %v598
        %806 = vst [vmem:[%s792 + $0x218] sm:$0xff] %v714
        %807 = vst [vmem:[%s792 + $0x310] sm:$0xff] %v601
        %808 = vst [vmem:[%s792 + $0x318] sm:$0xff] %v717
        %809 = vst [vmem:[%s792 + $0x20] sm:$0xff] %v592
        %810 = vst [vmem:[%s792 + $0x28] sm:$0xff] %v708
        %811 = vst [vmem:[%s792 + $0x120] sm:$0xff] %v595
        %812 = vst [vmem:[%s792 + $0x128] sm:$0xff] %v711
        %813 = vst [vmem:[%s792 + $0x220] sm:$0xff] %v598
        %814 = vst [vmem:[%s792 + $0x228] sm:$0xff] %v714
        %815 = vst [vmem:[%s792 + $0x320] sm:$0xff] %v601
        %816 = vst [vmem:[%s792 + $0x328] sm:$0xff] %v717
        %817 = vst [vmem:[%s792 + $0x30] sm:$0xff] %v592
        %818 = vst [vmem:[%s792 + $0x38] sm:$0xff] %v708
        %819 = vst [vmem:[%s792 + $0x130] sm:$0xff] %v595
        %820 = vst [vmem:[%s792 + $0x138] sm:$0xff] %v711
        %821 = vst [vmem:[%s792 + $0x230] sm:$0xff] %v598
        %822 = vst [vmem:[%s792 + $0x238] sm:$0xff] %v714
        %823 = vst [vmem:[%s792 + $0x330] sm:$0xff] %v601
        %824 = vst [vmem:[%s792 + $0x338] sm:$0xff] %v717
        %s825 = scalar_lea.vmem %s324, 128 [#allocation11]
        %826 = vst [vmem:[%s825] sm:$0xff] %v592
        %827 = vst [vmem:[%s825 + $0x8] sm:$0xff] %v708
        %828 = vst [vmem:[%s825 + $0x100] sm:$0xff] %v595
        %829 = vst [vmem:[%s825 + $0x108] sm:$0xff] %v711
        %830 = vst [vmem:[%s825 + $0x200] sm:$0xff] %v598
        %831 = vst [vmem:[%s825 + $0x208] sm:$0xff] %v714
        %832 = vst [vmem:[%s825 + $0x300] sm:$0xff] %v601
        %833 = vst [vmem:[%s825 + $0x308] sm:$0xff] %v717
        %834 = vst [vmem:[%s825 + $0x10] sm:$0xff] %v592
        %835 = vst [vmem:[%s825 + $0x18] sm:$0xff] %v708
        %836 = vst [vmem:[%s825 + $0x110] sm:$0xff] %v595
        %837 = vst [vmem:[%s825 + $0x118] sm:$0xff] %v711
        %838 = vst [vmem:[%s825 + $0x210] sm:$0xff] %v598
        %839 = vst [vmem:[%s825 + $0x218] sm:$0xff] %v714
        %840 = vst [vmem:[%s825 + $0x310] sm:$0xff] %v601
        %841 = vst [vmem:[%s825 + $0x318] sm:$0xff] %v717
        %842 = vst [vmem:[%s825 + $0x20] sm:$0xff] %v592
        %843 = vst [vmem:[%s825 + $0x28] sm:$0xff] %v708
        %844 = vst [vmem:[%s825 + $0x120] sm:$0xff] %v595
        %845 = vst [vmem:[%s825 + $0x128] sm:$0xff] %v711
        %846 = vst [vmem:[%s825 + $0x220] sm:$0xff] %v598
        %847 = vst [vmem:[%s825 + $0x228] sm:$0xff] %v714
        %848 = vst [vmem:[%s825 + $0x320] sm:$0xff] %v601
        %849 = vst [vmem:[%s825 + $0x328] sm:$0xff] %v717
        %850 = vst [vmem:[%s825 + $0x30] sm:$0xff] %v592
        %851 = vst [vmem:[%s825 + $0x38] sm:$0xff] %v708
        %852 = vst [vmem:[%s825 + $0x130] sm:$0xff] %v595
        %853 = vst [vmem:[%s825 + $0x138] sm:$0xff] %v711
        %854 = vst [vmem:[%s825 + $0x230] sm:$0xff] %v598
        %855 = vst [vmem:[%s825 + $0x238] sm:$0xff] %v714
        %856 = vst [vmem:[%s825 + $0x330] sm:$0xff] %v601
        %857 = vst [vmem:[%s825 + $0x338] sm:$0xff] %v717
        %s858 = scalar_lea.vmem %s324, 192 [#allocation11]
        %859 = vst [vmem:[%s858] sm:$0xff] %v592
        %860 = vst [vmem:[%s858 + $0x8] sm:$0xff] %v708
        %861 = vst [vmem:[%s858 + $0x100] sm:$0xff] %v595
        %862 = vst [vmem:[%s858 + $0x108] sm:$0xff] %v711
        %863 = vst [vmem:[%s858 + $0x200] sm:$0xff] %v598
        %864 = vst [vmem:[%s858 + $0x208] sm:$0xff] %v714
        %865 = vst [vmem:[%s858 + $0x300] sm:$0xff] %v601
        %866 = vst [vmem:[%s858 + $0x308] sm:$0xff] %v717
        %867 = vst [vmem:[%s858 + $0x10] sm:$0xff] %v592
        %868 = vst [vmem:[%s858 + $0x18] sm:$0xff] %v708
        %869 = vst [vmem:[%s858 + $0x110] sm:$0xff] %v595
        %870 = vst [vmem:[%s858 + $0x118] sm:$0xff] %v711
        %871 = vst [vmem:[%s858 + $0x210] sm:$0xff] %v598
        %872 = vst [vmem:[%s858 + $0x218] sm:$0xff] %v714
        %873 = vst [vmem:[%s858 + $0x310] sm:$0xff] %v601
        %874 = vst [vmem:[%s858 + $0x318] sm:$0xff] %v717
        %875 = vst [vmem:[%s858 + $0x20] sm:$0xff] %v592
        %876 = vst [vmem:[%s858 + $0x28] sm:$0xff] %v708
        %877 = vst [vmem:[%s858 + $0x120] sm:$0xff] %v595
        %878 = vst [vmem:[%s858 + $0x128] sm:$0xff] %v711
        %879 = vst [vmem:[%s858 + $0x220] sm:$0xff] %v598
        %880 = vst [vmem:[%s858 + $0x228] sm:$0xff] %v714
        %881 = vst [vmem:[%s858 + $0x320] sm:$0xff] %v601
        %882 = vst [vmem:[%s858 + $0x328] sm:$0xff] %v717
        %883 = vst [vmem:[%s858 + $0x30] sm:$0xff] %v592
        %884 = vst [vmem:[%s858 + $0x38] sm:$0xff] %v708
        %885 = vst [vmem:[%s858 + $0x130] sm:$0xff] %v595
        %886 = vst [vmem:[%s858 + $0x138] sm:$0xff] %v711
        %887 = vst [vmem:[%s858 + $0x230] sm:$0xff] %v598
        %888 = vst [vmem:[%s858 + $0x238] sm:$0xff] %v714
        %889 = vst [vmem:[%s858 + $0x330] sm:$0xff] %v601
        %890 = vst [vmem:[%s858 + $0x338] sm:$0xff] %v717
        %891 = vst [vmem:[%s331] sm:$0xff] %v592
        %892 = vst [vmem:[%s331 + $0x8] sm:$0xff] %v708
        %893 = vst [vmem:[%s331 + $0x400] sm:$0xff] %v595
        %894 = vst [vmem:[%s331 + $0x408] sm:$0xff] %v711
        %895 = vst [vmem:[%s331 + $0x800] sm:$0xff] %v598
        %896 = vst [vmem:[%s331 + $0x808] sm:$0xff] %v714
        %897 = vst [vmem:[%s331 + $0xc00] sm:$0xff] %v601
        %898 = vst [vmem:[%s331 + $0xc08] sm:$0xff] %v717
        %899 = vst [vmem:[%s331 + $0x10] sm:$0xff] %v592
        %900 = vst [vmem:[%s331 + $0x18] sm:$0xff] %v708
        %901 = vst [vmem:[%s331 + $0x410] sm:$0xff] %v595
        %902 = vst [vmem:[%s331 + $0x418] sm:$0xff] %v711
        %903 = vst [vmem:[%s331 + $0x810] sm:$0xff] %v598
        %904 = vst [vmem:[%s331 + $0x818] sm:$0xff] %v714
        %905 = vst [vmem:[%s331 + $0xc10] sm:$0xff] %v601
        %906 = vst [vmem:[%s331 + $0xc18] sm:$0xff] %v717
        %907 = vst [vmem:[%s331 + $0x20] sm:$0xff] %v592
        %908 = vst [vmem:[%s331 + $0x28] sm:$0xff] %v708
        %909 = vst [vmem:[%s331 + $0x420] sm:$0xff] %v595
        %910 = vst [vmem:[%s331 + $0x428] sm:$0xff] %v711
        %911 = vst [vmem:[%s331 + $0x820] sm:$0xff] %v598
        %912 = vst [vmem:[%s331 + $0x828] sm:$0xff] %v714
        %913 = vst [vmem:[%s331 + $0xc20] sm:$0xff] %v601
        %914 = vst [vmem:[%s331 + $0xc28] sm:$0xff] %v717
        %915 = vst [vmem:[%s331 + $0x30] sm:$0xff] %v592
        %916 = vst [vmem:[%s331 + $0x38] sm:$0xff] %v708
        %917 = vst [vmem:[%s331 + $0x430] sm:$0xff] %v595
        %918 = vst [vmem:[%s331 + $0x438] sm:$0xff] %v711
        %919 = vst [vmem:[%s331 + $0x830] sm:$0xff] %v598
        %920 = vst [vmem:[%s331 + $0x838] sm:$0xff] %v714
        %921 = vst [vmem:[%s331 + $0xc30] sm:$0xff] %v601
        %922 = vst [vmem:[%s331 + $0xc38] sm:$0xff] %v717
        %923 = vst [vmem:[%s331 + $0x40] sm:$0xff] %v592
        %924 = vst [vmem:[%s331 + $0x48] sm:$0xff] %v708
        %925 = vst [vmem:[%s331 + $0x440] sm:$0xff] %v595
        %926 = vst [vmem:[%s331 + $0x448] sm:$0xff] %v711
        %927 = vst [vmem:[%s331 + $0x840] sm:$0xff] %v598
        %928 = vst [vmem:[%s331 + $0x848] sm:$0xff] %v714
        %929 = vst [vmem:[%s331 + $0xc40] sm:$0xff] %v601
        %930 = vst [vmem:[%s331 + $0xc48] sm:$0xff] %v717
        %931 = vst [vmem:[%s331 + $0x50] sm:$0xff] %v592
        %932 = vst [vmem:[%s331 + $0x58] sm:$0xff] %v708
        %933 = vst [vmem:[%s331 + $0x450] sm:$0xff] %v595
        %934 = vst [vmem:[%s331 + $0x458] sm:$0xff] %v711
        %935 = vst [vmem:[%s331 + $0x850] sm:$0xff] %v598
        %936 = vst [vmem:[%s331 + $0x858] sm:$0xff] %v714
        %937 = vst [vmem:[%s331 + $0xc50] sm:$0xff] %v601
        %938 = vst [vmem:[%s331 + $0xc58] sm:$0xff] %v717
        %939 = vst [vmem:[%s331 + $0x60] sm:$0xff] %v592
        %940 = vst [vmem:[%s331 + $0x68] sm:$0xff] %v708
        %941 = vst [vmem:[%s331 + $0x460] sm:$0xff] %v595
        %942 = vst [vmem:[%s331 + $0x468] sm:$0xff] %v711
        %943 = vst [vmem:[%s331 + $0x860] sm:$0xff] %v598
        %944 = vst [vmem:[%s331 + $0x868] sm:$0xff] %v714
        %945 = vst [vmem:[%s331 + $0xc60] sm:$0xff] %v601
        %946 = vst [vmem:[%s331 + $0xc68] sm:$0xff] %v717
        %947 = vst [vmem:[%s331 + $0x70] sm:$0xff] %v592
        %948 = vst [vmem:[%s331 + $0x78] sm:$0xff] %v708
        %949 = vst [vmem:[%s331 + $0x470] sm:$0xff] %v595
        %950 = vst [vmem:[%s331 + $0x478] sm:$0xff] %v711
        %951 = vst [vmem:[%s331 + $0x870] sm:$0xff] %v598
        %952 = vst [vmem:[%s331 + $0x878] sm:$0xff] %v714
        %953 = vst [vmem:[%s331 + $0xc70] sm:$0xff] %v601
        %954 = vst [vmem:[%s331 + $0xc78] sm:$0xff] %v717
        %s955 = scalar_lea.vmem %s331, 128 [#allocation12]
        %956 = vst [vmem:[%s955] sm:$0xff] %v592
        %957 = vst [vmem:[%s955 + $0x8] sm:$0xff] %v708
        %958 = vst [vmem:[%s955 + $0x400] sm:$0xff] %v595
        %959 = vst [vmem:[%s955 + $0x408] sm:$0xff] %v711
        %960 = vst [vmem:[%s955 + $0x800] sm:$0xff] %v598
        %961 = vst [vmem:[%s955 + $0x808] sm:$0xff] %v714
        %962 = vst [vmem:[%s955 + $0xc00] sm:$0xff] %v601
        %963 = vst [vmem:[%s955 + $0xc08] sm:$0xff] %v717
        %964 = vst [vmem:[%s955 + $0x10] sm:$0xff] %v592
        %965 = vst [vmem:[%s955 + $0x18] sm:$0xff] %v708
        %966 = vst [vmem:[%s955 + $0x410] sm:$0xff] %v595
        %967 = vst [vmem:[%s955 + $0x418] sm:$0xff] %v711
        %968 = vst [vmem:[%s955 + $0x810] sm:$0xff] %v598
        %969 = vst [vmem:[%s955 + $0x818] sm:$0xff] %v714
        %970 = vst [vmem:[%s955 + $0xc10] sm:$0xff] %v601
        %971 = vst [vmem:[%s955 + $0xc18] sm:$0xff] %v717
        %972 = vst [vmem:[%s955 + $0x20] sm:$0xff] %v592
        %973 = vst [vmem:[%s955 + $0x28] sm:$0xff] %v708
        %974 = vst [vmem:[%s955 + $0x420] sm:$0xff] %v595
        %975 = vst [vmem:[%s955 + $0x428] sm:$0xff] %v711
        %976 = vst [vmem:[%s955 + $0x820] sm:$0xff] %v598
        %977 = vst [vmem:[%s955 + $0x828] sm:$0xff] %v714
        %978 = vst [vmem:[%s955 + $0xc20] sm:$0xff] %v601
        %979 = vst [vmem:[%s955 + $0xc28] sm:$0xff] %v717
        %980 = vst [vmem:[%s955 + $0x30] sm:$0xff] %v592
        %981 = vst [vmem:[%s955 + $0x38] sm:$0xff] %v708
        %982 = vst [vmem:[%s955 + $0x430] sm:$0xff] %v595
        %983 = vst [vmem:[%s955 + $0x438] sm:$0xff] %v711
        %984 = vst [vmem:[%s955 + $0x830] sm:$0xff] %v598
        %985 = vst [vmem:[%s955 + $0x838] sm:$0xff] %v714
        %986 = vst [vmem:[%s955 + $0xc30] sm:$0xff] %v601
        %987 = vst [vmem:[%s955 + $0xc38] sm:$0xff] %v717
        %988 = vst [vmem:[%s955 + $0x40] sm:$0xff] %v592
        %989 = vst [vmem:[%s955 + $0x48] sm:$0xff] %v708
        %990 = vst [vmem:[%s955 + $0x440] sm:$0xff] %v595
        %991 = vst [vmem:[%s955 + $0x448] sm:$0xff] %v711
        %992 = vst [vmem:[%s955 + $0x840] sm:$0xff] %v598
        %993 = vst [vmem:[%s955 + $0x848] sm:$0xff] %v714
        %994 = vst [vmem:[%s955 + $0xc40] sm:$0xff] %v601
        %995 = vst [vmem:[%s955 + $0xc48] sm:$0xff] %v717
        %996 = vst [vmem:[%s955 + $0x50] sm:$0xff] %v592
        %997 = vst [vmem:[%s955 + $0x58] sm:$0xff] %v708
        %998 = vst [vmem:[%s955 + $0x450] sm:$0xff] %v595
        %999 = vst [vmem:[%s955 + $0x458] sm:$0xff] %v711
        %1000 = vst [vmem:[%s955 + $0x850] sm:$0xff] %v598
        %1001 = vst [vmem:[%s955 + $0x858] sm:$0xff] %v714
        %1002 = vst [vmem:[%s955 + $0xc50] sm:$0xff] %v601
        %1003 = vst [vmem:[%s955 + $0xc58] sm:$0xff] %v717
        %1004 = vst [vmem:[%s955 + $0x60] sm:$0xff] %v592
        %1005 = vst [vmem:[%s955 + $0x68] sm:$0xff] %v708
        %1006 = vst [vmem:[%s955 + $0x460] sm:$0xff] %v595
        %1007 = vst [vmem:[%s955 + $0x468] sm:$0xff] %v711
        %1008 = vst [vmem:[%s955 + $0x860] sm:$0xff] %v598
        %1009 = vst [vmem:[%s955 + $0x868] sm:$0xff] %v714
        %1010 = vst [vmem:[%s955 + $0xc60] sm:$0xff] %v601
        %1011 = vst [vmem:[%s955 + $0xc68] sm:$0xff] %v717
        %1012 = vst [vmem:[%s955 + $0x70] sm:$0xff] %v592
        %1013 = vst [vmem:[%s955 + $0x78] sm:$0xff] %v708
        %1014 = vst [vmem:[%s955 + $0x470] sm:$0xff] %v595
        %1015 = vst [vmem:[%s955 + $0x478] sm:$0xff] %v711
        %1016 = vst [vmem:[%s955 + $0x870] sm:$0xff] %v598
        %1017 = vst [vmem:[%s955 + $0x878] sm:$0xff] %v714
        %1018 = vst [vmem:[%s955 + $0xc70] sm:$0xff] %v601
        %1019 = vst [vmem:[%s955 + $0xc78] sm:$0xff] %v717
        %s1020 = scalar_lea.vmem %s331, 256 [#allocation12]
        %1021 = vst [vmem:[%s1020] sm:$0xff] %v592
        %1022 = vst [vmem:[%s1020 + $0x8] sm:$0xff] %v708
        %1023 = vst [vmem:[%s1020 + $0x400] sm:$0xff] %v595
        %1024 = vst [vmem:[%s1020 + $0x408] sm:$0xff] %v711
        %1025 = vst [vmem:[%s1020 + $0x800] sm:$0xff] %v598
        %1026 = vst [vmem:[%s1020 + $0x808] sm:$0xff] %v714
        %1027 = vst [vmem:[%s1020 + $0xc00] sm:$0xff] %v601
        %1028 = vst [vmem:[%s1020 + $0xc08] sm:$0xff] %v717
        %1029 = vst [vmem:[%s1020 + $0x10] sm:$0xff] %v592
        %1030 = vst [vmem:[%s1020 + $0x18] sm:$0xff] %v708
        %1031 = vst [vmem:[%s1020 + $0x410] sm:$0xff] %v595
        %1032 = vst [vmem:[%s1020 + $0x418] sm:$0xff] %v711
        %1033 = vst [vmem:[%s1020 + $0x810] sm:$0xff] %v598
        %1034 = vst [vmem:[%s1020 + $0x818] sm:$0xff] %v714
        %1035 = vst [vmem:[%s1020 + $0xc10] sm:$0xff] %v601
        %1036 = vst [vmem:[%s1020 + $0xc18] sm:$0xff] %v717
        %1037 = vst [vmem:[%s1020 + $0x20] sm:$0xff] %v592
        %1038 = vst [vmem:[%s1020 + $0x28] sm:$0xff] %v708
        %1039 = vst [vmem:[%s1020 + $0x420] sm:$0xff] %v595
        %1040 = vst [vmem:[%s1020 + $0x428] sm:$0xff] %v711
        %1041 = vst [vmem:[%s1020 + $0x820] sm:$0xff] %v598
        %1042 = vst [vmem:[%s1020 + $0x828] sm:$0xff] %v714
        %1043 = vst [vmem:[%s1020 + $0xc20] sm:$0xff] %v601
        %1044 = vst [vmem:[%s1020 + $0xc28] sm:$0xff] %v717
        %1045 = vst [vmem:[%s1020 + $0x30] sm:$0xff] %v592
        %1046 = vst [vmem:[%s1020 + $0x38] sm:$0xff] %v708
        %1047 = vst [vmem:[%s1020 + $0x430] sm:$0xff] %v595
        %1048 = vst [vmem:[%s1020 + $0x438] sm:$0xff] %v711
        %1049 = vst [vmem:[%s1020 + $0x830] sm:$0xff] %v598
        %1050 = vst [vmem:[%s1020 + $0x838] sm:$0xff] %v714
        %1051 = vst [vmem:[%s1020 + $0xc30] sm:$0xff] %v601
        %1052 = vst [vmem:[%s1020 + $0xc38] sm:$0xff] %v717
        %1053 = vst [vmem:[%s1020 + $0x40] sm:$0xff] %v592
        %1054 = vst [vmem:[%s1020 + $0x48] sm:$0xff] %v708
        %1055 = vst [vmem:[%s1020 + $0x440] sm:$0xff] %v595
        %1056 = vst [vmem:[%s1020 + $0x448] sm:$0xff] %v711
        %1057 = vst [vmem:[%s1020 + $0x840] sm:$0xff] %v598
        %1058 = vst [vmem:[%s1020 + $0x848] sm:$0xff] %v714
        %1059 = vst [vmem:[%s1020 + $0xc40] sm:$0xff] %v601
        %1060 = vst [vmem:[%s1020 + $0xc48] sm:$0xff] %v717
        %1061 = vst [vmem:[%s1020 + $0x50] sm:$0xff] %v592
        %1062 = vst [vmem:[%s1020 + $0x58] sm:$0xff] %v708
        %1063 = vst [vmem:[%s1020 + $0x450] sm:$0xff] %v595
        %1064 = vst [vmem:[%s1020 + $0x458] sm:$0xff] %v711
        %1065 = vst [vmem:[%s1020 + $0x850] sm:$0xff] %v598
        %1066 = vst [vmem:[%s1020 + $0x858] sm:$0xff] %v714
        %1067 = vst [vmem:[%s1020 + $0xc50] sm:$0xff] %v601
        %1068 = vst [vmem:[%s1020 + $0xc58] sm:$0xff] %v717
        %1069 = vst [vmem:[%s1020 + $0x60] sm:$0xff] %v592
        %1070 = vst [vmem:[%s1020 + $0x68] sm:$0xff] %v708
        %1071 = vst [vmem:[%s1020 + $0x460] sm:$0xff] %v595
        %1072 = vst [vmem:[%s1020 + $0x468] sm:$0xff] %v711
        %1073 = vst [vmem:[%s1020 + $0x860] sm:$0xff] %v598
        %1074 = vst [vmem:[%s1020 + $0x868] sm:$0xff] %v714
        %1075 = vst [vmem:[%s1020 + $0xc60] sm:$0xff] %v601
        %1076 = vst [vmem:[%s1020 + $0xc68] sm:$0xff] %v717
        %1077 = vst [vmem:[%s1020 + $0x70] sm:$0xff] %v592
        %1078 = vst [vmem:[%s1020 + $0x78] sm:$0xff] %v708
        %1079 = vst [vmem:[%s1020 + $0x470] sm:$0xff] %v595
        %1080 = vst [vmem:[%s1020 + $0x478] sm:$0xff] %v711
        %1081 = vst [vmem:[%s1020 + $0x870] sm:$0xff] %v598
        %1082 = vst [vmem:[%s1020 + $0x878] sm:$0xff] %v714
        %1083 = vst [vmem:[%s1020 + $0xc70] sm:$0xff] %v601
        %1084 = vst [vmem:[%s1020 + $0xc78] sm:$0xff] %v717
        %s1085 = scalar_lea.vmem %s331, 384 [#allocation12]
        %1086 = vst [vmem:[%s1085] sm:$0xff] %v592
        %1087 = vst [vmem:[%s1085 + $0x8] sm:$0xff] %v708
        %1088 = vst [vmem:[%s1085 + $0x400] sm:$0xff] %v595
        %1089 = vst [vmem:[%s1085 + $0x408] sm:$0xff] %v711
        %1090 = vst [vmem:[%s1085 + $0x800] sm:$0xff] %v598
        %1091 = vst [vmem:[%s1085 + $0x808] sm:$0xff] %v714
        %1092 = vst [vmem:[%s1085 + $0xc00] sm:$0xff] %v601
        %1093 = vst [vmem:[%s1085 + $0xc08] sm:$0xff] %v717
        %1094 = vst [vmem:[%s1085 + $0x10] sm:$0xff] %v592
        %1095 = vst [vmem:[%s1085 + $0x18] sm:$0xff] %v708
        %1096 = vst [vmem:[%s1085 + $0x410] sm:$0xff] %v595
        %1097 = vst [vmem:[%s1085 + $0x418] sm:$0xff] %v711
        %1098 = vst [vmem:[%s1085 + $0x810] sm:$0xff] %v598
        %1099 = vst [vmem:[%s1085 + $0x818] sm:$0xff] %v714
        %1100 = vst [vmem:[%s1085 + $0xc10] sm:$0xff] %v601
        %1101 = vst [vmem:[%s1085 + $0xc18] sm:$0xff] %v717
        %1102 = vst [vmem:[%s1085 + $0x20] sm:$0xff] %v592
        %1103 = vst [vmem:[%s1085 + $0x28] sm:$0xff] %v708
        %1104 = vst [vmem:[%s1085 + $0x420] sm:$0xff] %v595
        %1105 = vst [vmem:[%s1085 + $0x428] sm:$0xff] %v711
        %1106 = vst [vmem:[%s1085 + $0x820] sm:$0xff] %v598
        %1107 = vst [vmem:[%s1085 + $0x828] sm:$0xff] %v714
        %1108 = vst [vmem:[%s1085 + $0xc20] sm:$0xff] %v601
        %1109 = vst [vmem:[%s1085 + $0xc28] sm:$0xff] %v717
        %1110 = vst [vmem:[%s1085 + $0x30] sm:$0xff] %v592
        %1111 = vst [vmem:[%s1085 + $0x38] sm:$0xff] %v708
        %1112 = vst [vmem:[%s1085 + $0x430] sm:$0xff] %v595
        %1113 = vst [vmem:[%s1085 + $0x438] sm:$0xff] %v711
        %1114 = vst [vmem:[%s1085 + $0x830] sm:$0xff] %v598
        %1115 = vst [vmem:[%s1085 + $0x838] sm:$0xff] %v714
        %1116 = vst [vmem:[%s1085 + $0xc30] sm:$0xff] %v601
        %1117 = vst [vmem:[%s1085 + $0xc38] sm:$0xff] %v717
        %1118 = vst [vmem:[%s1085 + $0x40] sm:$0xff] %v592
        %1119 = vst [vmem:[%s1085 + $0x48] sm:$0xff] %v708
        %1120 = vst [vmem:[%s1085 + $0x440] sm:$0xff] %v595
        %1121 = vst [vmem:[%s1085 + $0x448] sm:$0xff] %v711
        %1122 = vst [vmem:[%s1085 + $0x840] sm:$0xff] %v598
        %1123 = vst [vmem:[%s1085 + $0x848] sm:$0xff] %v714
        %1124 = vst [vmem:[%s1085 + $0xc40] sm:$0xff] %v601
        %1125 = vst [vmem:[%s1085 + $0xc48] sm:$0xff] %v717
        %1126 = vst [vmem:[%s1085 + $0x50] sm:$0xff] %v592
        %1127 = vst [vmem:[%s1085 + $0x58] sm:$0xff] %v708
        %1128 = vst [vmem:[%s1085 + $0x450] sm:$0xff] %v595
        %1129 = vst [vmem:[%s1085 + $0x458] sm:$0xff] %v711
        %1130 = vst [vmem:[%s1085 + $0x850] sm:$0xff] %v598
        %1131 = vst [vmem:[%s1085 + $0x858] sm:$0xff] %v714
        %1132 = vst [vmem:[%s1085 + $0xc50] sm:$0xff] %v601
        %1133 = vst [vmem:[%s1085 + $0xc58] sm:$0xff] %v717
        %1134 = vst [vmem:[%s1085 + $0x60] sm:$0xff] %v592
        %1135 = vst [vmem:[%s1085 + $0x68] sm:$0xff] %v708
        %1136 = vst [vmem:[%s1085 + $0x460] sm:$0xff] %v595
        %1137 = vst [vmem:[%s1085 + $0x468] sm:$0xff] %v711
        %1138 = vst [vmem:[%s1085 + $0x860] sm:$0xff] %v598
        %1139 = vst [vmem:[%s1085 + $0x868] sm:$0xff] %v714
        %1140 = vst [vmem:[%s1085 + $0xc60] sm:$0xff] %v601
        %1141 = vst [vmem:[%s1085 + $0xc68] sm:$0xff] %v717
        %1142 = vst [vmem:[%s1085 + $0x70] sm:$0xff] %v592
        %1143 = vst [vmem:[%s1085 + $0x78] sm:$0xff] %v708
        %1144 = vst [vmem:[%s1085 + $0x470] sm:$0xff] %v595
        %1145 = vst [vmem:[%s1085 + $0x478] sm:$0xff] %v711
        %1146 = vst [vmem:[%s1085 + $0x870] sm:$0xff] %v598
        %1147 = vst [vmem:[%s1085 + $0x878] sm:$0xff] %v714
        %1148 = vst [vmem:[%s1085 + $0xc70] sm:$0xff] %v601
        %1149 = vst [vmem:[%s1085 + $0xc78] sm:$0xff] %v717
        %s1150 = scalar_lea.vmem %s331, 512 [#allocation12]
        %1151 = vst [vmem:[%s1150] sm:$0xff] %v592
        %1152 = vst [vmem:[%s1150 + $0x8] sm:$0xff] %v708
        %1153 = vst [vmem:[%s1150 + $0x400] sm:$0xff] %v595
        %1154 = vst [vmem:[%s1150 + $0x408] sm:$0xff] %v711
        %1155 = vst [vmem:[%s1150 + $0x800] sm:$0xff] %v598
        %1156 = vst [vmem:[%s1150 + $0x808] sm:$0xff] %v714
        %1157 = vst [vmem:[%s1150 + $0xc00] sm:$0xff] %v601
        %1158 = vst [vmem:[%s1150 + $0xc08] sm:$0xff] %v717
        %1159 = vst [vmem:[%s1150 + $0x10] sm:$0xff] %v592
        %1160 = vst [vmem:[%s1150 + $0x18] sm:$0xff] %v708
        %1161 = vst [vmem:[%s1150 + $0x410] sm:$0xff] %v595
        %1162 = vst [vmem:[%s1150 + $0x418] sm:$0xff] %v711
        %1163 = vst [vmem:[%s1150 + $0x810] sm:$0xff] %v598
        %1164 = vst [vmem:[%s1150 + $0x818] sm:$0xff] %v714
        %1165 = vst [vmem:[%s1150 + $0xc10] sm:$0xff] %v601
        %1166 = vst [vmem:[%s1150 + $0xc18] sm:$0xff] %v717
        %1167 = vst [vmem:[%s1150 + $0x20] sm:$0xff] %v592
        %1168 = vst [vmem:[%s1150 + $0x28] sm:$0xff] %v708
        %1169 = vst [vmem:[%s1150 + $0x420] sm:$0xff] %v595
        %1170 = vst [vmem:[%s1150 + $0x428] sm:$0xff] %v711
        %1171 = vst [vmem:[%s1150 + $0x820] sm:$0xff] %v598
        %1172 = vst [vmem:[%s1150 + $0x828] sm:$0xff] %v714
        %1173 = vst [vmem:[%s1150 + $0xc20] sm:$0xff] %v601
        %1174 = vst [vmem:[%s1150 + $0xc28] sm:$0xff] %v717
        %1175 = vst [vmem:[%s1150 + $0x30] sm:$0xff] %v592
        %1176 = vst [vmem:[%s1150 + $0x38] sm:$0xff] %v708
        %1177 = vst [vmem:[%s1150 + $0x430] sm:$0xff] %v595
        %1178 = vst [vmem:[%s1150 + $0x438] sm:$0xff] %v711
        %1179 = vst [vmem:[%s1150 + $0x830] sm:$0xff] %v598
        %1180 = vst [vmem:[%s1150 + $0x838] sm:$0xff] %v714
        %1181 = vst [vmem:[%s1150 + $0xc30] sm:$0xff] %v601
        %1182 = vst [vmem:[%s1150 + $0xc38] sm:$0xff] %v717
        %1183 = vst [vmem:[%s1150 + $0x40] sm:$0xff] %v592
        %1184 = vst [vmem:[%s1150 + $0x48] sm:$0xff] %v708
        %1185 = vst [vmem:[%s1150 + $0x440] sm:$0xff] %v595
        %1186 = vst [vmem:[%s1150 + $0x448] sm:$0xff] %v711
        %1187 = vst [vmem:[%s1150 + $0x840] sm:$0xff] %v598
        %1188 = vst [vmem:[%s1150 + $0x848] sm:$0xff] %v714
        %1189 = vst [vmem:[%s1150 + $0xc40] sm:$0xff] %v601
        %1190 = vst [vmem:[%s1150 + $0xc48] sm:$0xff] %v717
        %1191 = vst [vmem:[%s1150 + $0x50] sm:$0xff] %v592
        %1192 = vst [vmem:[%s1150 + $0x58] sm:$0xff] %v708
        %1193 = vst [vmem:[%s1150 + $0x450] sm:$0xff] %v595
        %1194 = vst [vmem:[%s1150 + $0x458] sm:$0xff] %v711
        %1195 = vst [vmem:[%s1150 + $0x850] sm:$0xff] %v598
        %1196 = vst [vmem:[%s1150 + $0x858] sm:$0xff] %v714
        %1197 = vst [vmem:[%s1150 + $0xc50] sm:$0xff] %v601
        %1198 = vst [vmem:[%s1150 + $0xc58] sm:$0xff] %v717
        %1199 = vst [vmem:[%s1150 + $0x60] sm:$0xff] %v592
        %1200 = vst [vmem:[%s1150 + $0x68] sm:$0xff] %v708
        %1201 = vst [vmem:[%s1150 + $0x460] sm:$0xff] %v595
        %1202 = vst [vmem:[%s1150 + $0x468] sm:$0xff] %v711
        %1203 = vst [vmem:[%s1150 + $0x860] sm:$0xff] %v598
        %1204 = vst [vmem:[%s1150 + $0x868] sm:$0xff] %v714
        %1205 = vst [vmem:[%s1150 + $0xc60] sm:$0xff] %v601
        %1206 = vst [vmem:[%s1150 + $0xc68] sm:$0xff] %v717
        %1207 = vst [vmem:[%s1150 + $0x70] sm:$0xff] %v592
        %1208 = vst [vmem:[%s1150 + $0x78] sm:$0xff] %v708
        %1209 = vst [vmem:[%s1150 + $0x470] sm:$0xff] %v595
        %1210 = vst [vmem:[%s1150 + $0x478] sm:$0xff] %v711
        %1211 = vst [vmem:[%s1150 + $0x870] sm:$0xff] %v598
        %1212 = vst [vmem:[%s1150 + $0x878] sm:$0xff] %v714
        %1213 = vst [vmem:[%s1150 + $0xc70] sm:$0xff] %v601
        %1214 = vst [vmem:[%s1150 + $0xc78] sm:$0xff] %v717
        %s1215 = scalar_lea.vmem %s331, 640 [#allocation12]
        %1216 = vst [vmem:[%s1215] sm:$0xff] %v592
        %1217 = vst [vmem:[%s1215 + $0x8] sm:$0xff] %v708
        %1218 = vst [vmem:[%s1215 + $0x400] sm:$0xff] %v595
        %1219 = vst [vmem:[%s1215 + $0x408] sm:$0xff] %v711
        %1220 = vst [vmem:[%s1215 + $0x800] sm:$0xff] %v598
        %1221 = vst [vmem:[%s1215 + $0x808] sm:$0xff] %v714
        %1222 = vst [vmem:[%s1215 + $0xc00] sm:$0xff] %v601
        %1223 = vst [vmem:[%s1215 + $0xc08] sm:$0xff] %v717
        %1224 = vst [vmem:[%s1215 + $0x10] sm:$0xff] %v592
        %1225 = vst [vmem:[%s1215 + $0x18] sm:$0xff] %v708
        %1226 = vst [vmem:[%s1215 + $0x410] sm:$0xff] %v595
        %1227 = vst [vmem:[%s1215 + $0x418] sm:$0xff] %v711
        %1228 = vst [vmem:[%s1215 + $0x810] sm:$0xff] %v598
        %1229 = vst [vmem:[%s1215 + $0x818] sm:$0xff] %v714
        %1230 = vst [vmem:[%s1215 + $0xc10] sm:$0xff] %v601
        %1231 = vst [vmem:[%s1215 + $0xc18] sm:$0xff] %v717
        %1232 = vst [vmem:[%s1215 + $0x20] sm:$0xff] %v592
        %1233 = vst [vmem:[%s1215 + $0x28] sm:$0xff] %v708
        %1234 = vst [vmem:[%s1215 + $0x420] sm:$0xff] %v595
        %1235 = vst [vmem:[%s1215 + $0x428] sm:$0xff] %v711
        %1236 = vst [vmem:[%s1215 + $0x820] sm:$0xff] %v598
        %1237 = vst [vmem:[%s1215 + $0x828] sm:$0xff] %v714
        %1238 = vst [vmem:[%s1215 + $0xc20] sm:$0xff] %v601
        %1239 = vst [vmem:[%s1215 + $0xc28] sm:$0xff] %v717
        %1240 = vst [vmem:[%s1215 + $0x30] sm:$0xff] %v592
        %1241 = vst [vmem:[%s1215 + $0x38] sm:$0xff] %v708
        %1242 = vst [vmem:[%s1215 + $0x430] sm:$0xff] %v595
        %1243 = vst [vmem:[%s1215 + $0x438] sm:$0xff] %v711
        %1244 = vst [vmem:[%s1215 + $0x830] sm:$0xff] %v598
        %1245 = vst [vmem:[%s1215 + $0x838] sm:$0xff] %v714
        %1246 = vst [vmem:[%s1215 + $0xc30] sm:$0xff] %v601
        %1247 = vst [vmem:[%s1215 + $0xc38] sm:$0xff] %v717
        %1248 = vst [vmem:[%s1215 + $0x40] sm:$0xff] %v592
        %1249 = vst [vmem:[%s1215 + $0x48] sm:$0xff] %v708
        %1250 = vst [vmem:[%s1215 + $0x440] sm:$0xff] %v595
        %1251 = vst [vmem:[%s1215 + $0x448] sm:$0xff] %v711
        %1252 = vst [vmem:[%s1215 + $0x840] sm:$0xff] %v598
        %1253 = vst [vmem:[%s1215 + $0x848] sm:$0xff] %v714
        %1254 = vst [vmem:[%s1215 + $0xc40] sm:$0xff] %v601
        %1255 = vst [vmem:[%s1215 + $0xc48] sm:$0xff] %v717
        %1256 = vst [vmem:[%s1215 + $0x50] sm:$0xff] %v592
        %1257 = vst [vmem:[%s1215 + $0x58] sm:$0xff] %v708
        %1258 = vst [vmem:[%s1215 + $0x450] sm:$0xff] %v595
        %1259 = vst [vmem:[%s1215 + $0x458] sm:$0xff] %v711
        %1260 = vst [vmem:[%s1215 + $0x850] sm:$0xff] %v598
        %1261 = vst [vmem:[%s1215 + $0x858] sm:$0xff] %v714
        %1262 = vst [vmem:[%s1215 + $0xc50] sm:$0xff] %v601
        %1263 = vst [vmem:[%s1215 + $0xc58] sm:$0xff] %v717
        %1264 = vst [vmem:[%s1215 + $0x60] sm:$0xff] %v592
        %1265 = vst [vmem:[%s1215 + $0x68] sm:$0xff] %v708
        %1266 = vst [vmem:[%s1215 + $0x460] sm:$0xff] %v595
        %1267 = vst [vmem:[%s1215 + $0x468] sm:$0xff] %v711
        %1268 = vst [vmem:[%s1215 + $0x860] sm:$0xff] %v598
        %1269 = vst [vmem:[%s1215 + $0x868] sm:$0xff] %v714
        %1270 = vst [vmem:[%s1215 + $0xc60] sm:$0xff] %v601
        %1271 = vst [vmem:[%s1215 + $0xc68] sm:$0xff] %v717
        %1272 = vst [vmem:[%s1215 + $0x70] sm:$0xff] %v592
        %1273 = vst [vmem:[%s1215 + $0x78] sm:$0xff] %v708
        %1274 = vst [vmem:[%s1215 + $0x470] sm:$0xff] %v595
        %1275 = vst [vmem:[%s1215 + $0x478] sm:$0xff] %v711
        %1276 = vst [vmem:[%s1215 + $0x870] sm:$0xff] %v598
        %1277 = vst [vmem:[%s1215 + $0x878] sm:$0xff] %v714
        %1278 = vst [vmem:[%s1215 + $0xc70] sm:$0xff] %v601
        %1279 = vst [vmem:[%s1215 + $0xc78] sm:$0xff] %v717
        %s1280 = scalar_lea.vmem %s331, 768 [#allocation12]
        %1281 = vst [vmem:[%s1280] sm:$0xff] %v592
        %1282 = vst [vmem:[%s1280 + $0x8] sm:$0xff] %v708
        %1283 = vst [vmem:[%s1280 + $0x400] sm:$0xff] %v595
        %1284 = vst [vmem:[%s1280 + $0x408] sm:$0xff] %v711
        %1285 = vst [vmem:[%s1280 + $0x800] sm:$0xff] %v598
        %1286 = vst [vmem:[%s1280 + $0x808] sm:$0xff] %v714
        %1287 = vst [vmem:[%s1280 + $0xc00] sm:$0xff] %v601
        %1288 = vst [vmem:[%s1280 + $0xc08] sm:$0xff] %v717
        %1289 = vst [vmem:[%s1280 + $0x10] sm:$0xff] %v592
        %1290 = vst [vmem:[%s1280 + $0x18] sm:$0xff] %v708
        %1291 = vst [vmem:[%s1280 + $0x410] sm:$0xff] %v595
        %1292 = vst [vmem:[%s1280 + $0x418] sm:$0xff] %v711
        %1293 = vst [vmem:[%s1280 + $0x810] sm:$0xff] %v598
        %1294 = vst [vmem:[%s1280 + $0x818] sm:$0xff] %v714
        %1295 = vst [vmem:[%s1280 + $0xc10] sm:$0xff] %v601
        %1296 = vst [vmem:[%s1280 + $0xc18] sm:$0xff] %v717
        %1297 = vst [vmem:[%s1280 + $0x20] sm:$0xff] %v592
        %1298 = vst [vmem:[%s1280 + $0x28] sm:$0xff] %v708
        %1299 = vst [vmem:[%s1280 + $0x420] sm:$0xff] %v595
        %1300 = vst [vmem:[%s1280 + $0x428] sm:$0xff] %v711
        %1301 = vst [vmem:[%s1280 + $0x820] sm:$0xff] %v598
        %1302 = vst [vmem:[%s1280 + $0x828] sm:$0xff] %v714
        %1303 = vst [vmem:[%s1280 + $0xc20] sm:$0xff] %v601
        %1304 = vst [vmem:[%s1280 + $0xc28] sm:$0xff] %v717
        %1305 = vst [vmem:[%s1280 + $0x30] sm:$0xff] %v592
        %1306 = vst [vmem:[%s1280 + $0x38] sm:$0xff] %v708
        %1307 = vst [vmem:[%s1280 + $0x430] sm:$0xff] %v595
        %1308 = vst [vmem:[%s1280 + $0x438] sm:$0xff] %v711
        %1309 = vst [vmem:[%s1280 + $0x830] sm:$0xff] %v598
        %1310 = vst [vmem:[%s1280 + $0x838] sm:$0xff] %v714
        %1311 = vst [vmem:[%s1280 + $0xc30] sm:$0xff] %v601
        %1312 = vst [vmem:[%s1280 + $0xc38] sm:$0xff] %v717
        %1313 = vst [vmem:[%s1280 + $0x40] sm:$0xff] %v592
        %1314 = vst [vmem:[%s1280 + $0x48] sm:$0xff] %v708
        %1315 = vst [vmem:[%s1280 + $0x440] sm:$0xff] %v595
        %1316 = vst [vmem:[%s1280 + $0x448] sm:$0xff] %v711
        %1317 = vst [vmem:[%s1280 + $0x840] sm:$0xff] %v598
        %1318 = vst [vmem:[%s1280 + $0x848] sm:$0xff] %v714
        %1319 = vst [vmem:[%s1280 + $0xc40] sm:$0xff] %v601
        %1320 = vst [vmem:[%s1280 + $0xc48] sm:$0xff] %v717
        %1321 = vst [vmem:[%s1280 + $0x50] sm:$0xff] %v592
        %1322 = vst [vmem:[%s1280 + $0x58] sm:$0xff] %v708
        %1323 = vst [vmem:[%s1280 + $0x450] sm:$0xff] %v595
        %1324 = vst [vmem:[%s1280 + $0x458] sm:$0xff] %v711
        %1325 = vst [vmem:[%s1280 + $0x850] sm:$0xff] %v598
        %1326 = vst [vmem:[%s1280 + $0x858] sm:$0xff] %v714
        %1327 = vst [vmem:[%s1280 + $0xc50] sm:$0xff] %v601
        %1328 = vst [vmem:[%s1280 + $0xc58] sm:$0xff] %v717
        %1329 = vst [vmem:[%s1280 + $0x60] sm:$0xff] %v592
        %1330 = vst [vmem:[%s1280 + $0x68] sm:$0xff] %v708
        %1331 = vst [vmem:[%s1280 + $0x460] sm:$0xff] %v595
        %1332 = vst [vmem:[%s1280 + $0x468] sm:$0xff] %v711
        %1333 = vst [vmem:[%s1280 + $0x860] sm:$0xff] %v598
        %1334 = vst [vmem:[%s1280 + $0x868] sm:$0xff] %v714
        %1335 = vst [vmem:[%s1280 + $0xc60] sm:$0xff] %v601
        %1336 = vst [vmem:[%s1280 + $0xc68] sm:$0xff] %v717
        %1337 = vst [vmem:[%s1280 + $0x70] sm:$0xff] %v592
        %1338 = vst [vmem:[%s1280 + $0x78] sm:$0xff] %v708
        %1339 = vst [vmem:[%s1280 + $0x470] sm:$0xff] %v595
        %1340 = vst [vmem:[%s1280 + $0x478] sm:$0xff] %v711
        %1341 = vst [vmem:[%s1280 + $0x870] sm:$0xff] %v598
        %1342 = vst [vmem:[%s1280 + $0x878] sm:$0xff] %v714
        %1343 = vst [vmem:[%s1280 + $0xc70] sm:$0xff] %v601
        %1344 = vst [vmem:[%s1280 + $0xc78] sm:$0xff] %v717
        %s1345 = scalar_lea.vmem %s331, 896 [#allocation12]
        %1346 = vst [vmem:[%s1345] sm:$0xff] %v592
        %1347 = vst [vmem:[%s1345 + $0x8] sm:$0xff] %v708
        %1348 = vst [vmem:[%s1345 + $0x400] sm:$0xff] %v595
        %1349 = vst [vmem:[%s1345 + $0x408] sm:$0xff] %v711
        %1350 = vst [vmem:[%s1345 + $0x800] sm:$0xff] %v598
        %1351 = vst [vmem:[%s1345 + $0x808] sm:$0xff] %v714
        %1352 = vst [vmem:[%s1345 + $0xc00] sm:$0xff] %v601
        %1353 = vst [vmem:[%s1345 + $0xc08] sm:$0xff] %v717
        %1354 = vst [vmem:[%s1345 + $0x10] sm:$0xff] %v592
        %1355 = vst [vmem:[%s1345 + $0x18] sm:$0xff] %v708
        %1356 = vst [vmem:[%s1345 + $0x410] sm:$0xff] %v595
        %1357 = vst [vmem:[%s1345 + $0x418] sm:$0xff] %v711
        %1358 = vst [vmem:[%s1345 + $0x810] sm:$0xff] %v598
        %1359 = vst [vmem:[%s1345 + $0x818] sm:$0xff] %v714
        %1360 = vst [vmem:[%s1345 + $0xc10] sm:$0xff] %v601
        %1361 = vst [vmem:[%s1345 + $0xc18] sm:$0xff] %v717
        %1362 = vst [vmem:[%s1345 + $0x20] sm:$0xff] %v592
        %1363 = vst [vmem:[%s1345 + $0x28] sm:$0xff] %v708
        %1364 = vst [vmem:[%s1345 + $0x420] sm:$0xff] %v595
        %1365 = vst [vmem:[%s1345 + $0x428] sm:$0xff] %v711
        %1366 = vst [vmem:[%s1345 + $0x820] sm:$0xff] %v598
        %1367 = vst [vmem:[%s1345 + $0x828] sm:$0xff] %v714
        %1368 = vst [vmem:[%s1345 + $0xc20] sm:$0xff] %v601
        %1369 = vst [vmem:[%s1345 + $0xc28] sm:$0xff] %v717
        %1370 = vst [vmem:[%s1345 + $0x30] sm:$0xff] %v592
        %1371 = vst [vmem:[%s1345 + $0x38] sm:$0xff] %v708
        %1372 = vst [vmem:[%s1345 + $0x430] sm:$0xff] %v595
        %1373 = vst [vmem:[%s1345 + $0x438] sm:$0xff] %v711
        %1374 = vst [vmem:[%s1345 + $0x830] sm:$0xff] %v598
        %1375 = vst [vmem:[%s1345 + $0x838] sm:$0xff] %v714
        %1376 = vst [vmem:[%s1345 + $0xc30] sm:$0xff] %v601
        %1377 = vst [vmem:[%s1345 + $0xc38] sm:$0xff] %v717
        %1378 = vst [vmem:[%s1345 + $0x40] sm:$0xff] %v592
        %1379 = vst [vmem:[%s1345 + $0x48] sm:$0xff] %v708
        %1380 = vst [vmem:[%s1345 + $0x440] sm:$0xff] %v595
        %1381 = vst [vmem:[%s1345 + $0x448] sm:$0xff] %v711
        %1382 = vst [vmem:[%s1345 + $0x840] sm:$0xff] %v598
        %1383 = vst [vmem:[%s1345 + $0x848] sm:$0xff] %v714
        %1384 = vst [vmem:[%s1345 + $0xc40] sm:$0xff] %v601
        %1385 = vst [vmem:[%s1345 + $0xc48] sm:$0xff] %v717
        %1386 = vst [vmem:[%s1345 + $0x50] sm:$0xff] %v592
        %1387 = vst [vmem:[%s1345 + $0x58] sm:$0xff] %v708
        %1388 = vst [vmem:[%s1345 + $0x450] sm:$0xff] %v595
        %1389 = vst [vmem:[%s1345 + $0x458] sm:$0xff] %v711
        %1390 = vst [vmem:[%s1345 + $0x850] sm:$0xff] %v598
        %1391 = vst [vmem:[%s1345 + $0x858] sm:$0xff] %v714
        %1392 = vst [vmem:[%s1345 + $0xc50] sm:$0xff] %v601
        %1393 = vst [vmem:[%s1345 + $0xc58] sm:$0xff] %v717
        %1394 = vst [vmem:[%s1345 + $0x60] sm:$0xff] %v592
        %1395 = vst [vmem:[%s1345 + $0x68] sm:$0xff] %v708
        %1396 = vst [vmem:[%s1345 + $0x460] sm:$0xff] %v595
        %1397 = vst [vmem:[%s1345 + $0x468] sm:$0xff] %v711
        %1398 = vst [vmem:[%s1345 + $0x860] sm:$0xff] %v598
        %1399 = vst [vmem:[%s1345 + $0x868] sm:$0xff] %v714
        %1400 = vst [vmem:[%s1345 + $0xc60] sm:$0xff] %v601
        %1401 = vst [vmem:[%s1345 + $0xc68] sm:$0xff] %v717
        %1402 = vst [vmem:[%s1345 + $0x70] sm:$0xff] %v592
        %1403 = vst [vmem:[%s1345 + $0x78] sm:$0xff] %v708
        %1404 = vst [vmem:[%s1345 + $0x470] sm:$0xff] %v595
        %1405 = vst [vmem:[%s1345 + $0x478] sm:$0xff] %v711
        %1406 = vst [vmem:[%s1345 + $0x870] sm:$0xff] %v598
        %1407 = vst [vmem:[%s1345 + $0x878] sm:$0xff] %v714
        %1408 = vst [vmem:[%s1345 + $0xc70] sm:$0xff] %v601
        %1409 = vst [vmem:[%s1345 + $0xc78] sm:$0xff] %v717
        %s1410 = sand.u32 %s107, 1
        %s1411 = scalar_lea.sflag [#allocation4], %s1410
        %s1412 = sand.u32 %s107, 1
        %s1413 = smul.addr %s1412, 64
        %s1414 = scalar_lea.vmem [#allocation8], %s1413
        %s1415 = sand.u32 %s31, 1
        %s1416 = scalar_lea.sflag [#allocation10], %s1415
        %s1417 = sand.u32 %s133, 1
        %s1418 = smul.addr %s1417, 256
        %s1419 = scalar_lea.vmem [#allocation9], %s1418
        %s1420 = sand.u32 %s31, 1
        %s1421 = scalar_lea.sflag [#allocation10], %s1420
        %s1422 = sand.u32 %s159, 1
        %s1423 = smul.addr %s1422, 1024
        %s1424 = scalar_lea.vmem [#allocation11], %s1423
        %s1425 = sand.u32 %s185, 1
        %s1426 = scalar_lea.sflag [#allocation13], %s1425
        %s1427 = sand.u32 %s185, 1
        %s1428 = smul.addr %s1427, 4096
        %s1429 = scalar_lea.vmem [#allocation12], %s1428
        // Predicated region
        $region45: #{tpu_custom_call.1} parent=31 // pred_check
          %p1430 = pneg %p117
        $region46: #{tpu_custom_call.1} parent=31 // pred_check_branch
          %1432 = sbr.rel (%p1430) target = $region48
        $region47: #{tpu_custom_call.1} parent=31 // pred_region
          %s1433 = smul.u32 4, %s31
          %1435 = vsyncadd %s1411, 0
          %s1436 = smul.addr %s1433, 2
          %s1437 = smul.addr %s1436, 8
          %s1438 = scalar_lea.hbm %s3, %s1437
          %s1439 = sshll.u32 %s1414, 4
          %s1440 = int_to_ptr.vmem [resolvable:$true] %s1439
          %s1441 = sshll.u32 %s1438, 4
          %s1442 = int_to_ptr.hbm [resolvable:$true] %s1441
          %1447 = dma.vmem_to_hbm [thread:$0]  %s1440, 1024, %s1442, %s1411, 256, 256, 16
        $region48: #{tpu_custom_call.1} parent=31 // pred_fallthru
          _
        // Predicated region
        $region49: #{tpu_custom_call.1} parent=31 // pred_check
          %p1448 = pneg %p143
        $region50: #{tpu_custom_call.1} parent=31 // pred_check_branch
          %1450 = sbr.rel (%p1448) target = $region52
        $region51: #{tpu_custom_call.1} parent=31 // pred_region
          %s1451 = smul.u32 4, %s31
          %1453 = vsyncadd %s1416, 0
          %s1454 = smul.addr %s1451, 8
          %s1455 = smul.addr %s1454, 8
          %s1456 = scalar_lea.hbm %s4, %s1455
          %s1457 = sshll.u32 %s1419, 4
          %s1458 = int_to_ptr.vmem [resolvable:$true] %s1457
          %s1459 = sshll.u32 %s1456, 4
          %s1460 = int_to_ptr.hbm [resolvable:$true] %s1459
          %1465 = dma.vmem_to_hbm [thread:$0]  %s1458, 4096, %s1460, %s1416, 512, 512, 32
        $region52: #{tpu_custom_call.1} parent=31 // pred_fallthru
          _
        // Predicated region
        $region53: #{tpu_custom_call.1} parent=31 // pred_check
          %p1466 = pneg %p169
        $region54: #{tpu_custom_call.1} parent=31 // pred_check_branch
          %1468 = sbr.rel (%p1466) target = $region56
        $region55: #{tpu_custom_call.1} parent=31 // pred_region
          %s1469 = smul.u32 4, %s31
          %1471 = vsyncadd %s1421, 0
          %s1472 = smul.addr %s1469, 32
          %s1473 = smul.addr %s1472, 8
          %s1474 = scalar_lea.hbm %s5, %s1473
          %s1475 = sshll.u32 %s1424, 4
          %s1476 = int_to_ptr.vmem [resolvable:$true] %s1475
          %s1477 = sshll.u32 %s1474, 4
          %s1478 = int_to_ptr.hbm [resolvable:$true] %s1477
          %1483 = dma.vmem_to_hbm [thread:$0]  %s1476, 16384, %s1478, %s1421, 1024, 1024, 64
        $region56: #{tpu_custom_call.1} parent=31 // pred_fallthru
          _
        // Predicated region
        $region57: #{tpu_custom_call.1} parent=31 // pred_check
          %p1484 = pneg %p195
        $region58: #{tpu_custom_call.1} parent=31 // pred_check_branch
          %1486 = sbr.rel (%p1484) target = $region60
        $region59: #{tpu_custom_call.1} parent=31 // pred_region
          %s1487 = smul.u32 4, %s31
          %1489 = vsyncadd %s1426, 0
          %s1490 = smul.addr %s1487, 128
          %s1491 = smul.addr %s1490, 8
          %s1492 = scalar_lea.hbm %s6, %s1491
          %s1493 = sshll.u32 %s1429, 4
          %s1494 = int_to_ptr.vmem [resolvable:$true] %s1493
          %s1495 = sshll.u32 %s1492, 4
          %s1496 = int_to_ptr.hbm [resolvable:$true] %s1495
          %1501 = dma.vmem_to_hbm [thread:$0]  %s1494, 65536, %s1496, %s1426, 2048, 2048, 128
        $region60: #{tpu_custom_call.1} parent=31 // pred_fallthru
          _
      $region32: #{tpu_custom_call.1} parent=5 // pred_fallthru
        _
      %p1502 = scmp.le.s32.totalorder 2, %s26
      // Predicated region
      $region61: #{tpu_custom_call.1} parent=5 // pred_check
        %p1503 = pneg %p1502
      $region62: #{tpu_custom_call.1} parent=5 // pred_check_branch
        %1505 = sbr.rel (%p1503) target = $region64
      $region63: #{tpu_custom_call.1} parent=5 // pred_region
        %s1506 = ssub.s32 %s26, 2
        // Predicated region
        $region65: #{tpu_custom_call.1} parent=63 // pred_check
          %p1507 = pneg %p123
        $region66: #{tpu_custom_call.1} parent=63 // pred_check_branch
          %1509 = sbr.rel (%p1507) target = $region68
        $region67: #{tpu_custom_call.1} parent=63 // pred_region
          %s1510 = sand.u32 %s108, 1
          %s1511 = scalar_lea.sflag [#allocation4], %s1510
          %s1512 = sand.u32 %s108, 1
          %s1513 = smul.addr %s1512, 64
          %s1514 = scalar_lea.vmem [#allocation8], %s1513
          %1516 = dma.done %s1511, 1024
        $region68: #{tpu_custom_call.1} parent=63 // pred_fallthru
          _
        // Predicated region
        $region69: #{tpu_custom_call.1} parent=63 // pred_check
          %p1517 = pneg %p149
        $region70: #{tpu_custom_call.1} parent=63 // pred_check_branch
          %1519 = sbr.rel (%p1517) target = $region72
        $region71: #{tpu_custom_call.1} parent=63 // pred_region
          %s1520 = sand.u32 %s32, 1
          %s1521 = scalar_lea.sflag [#allocation10], %s1520
          %s1522 = sand.u32 %s134, 1
          %s1523 = smul.addr %s1522, 256
          %s1524 = scalar_lea.vmem [#allocation9], %s1523
          %1526 = dma.done %s1521, 4096
        $region72: #{tpu_custom_call.1} parent=63 // pred_fallthru
          _
        // Predicated region
        $region73: #{tpu_custom_call.1} parent=63 // pred_check
          %p1527 = pneg %p175
        $region74: #{tpu_custom_call.1} parent=63 // pred_check_branch
          %1529 = sbr.rel (%p1527) target = $region76
        $region75: #{tpu_custom_call.1} parent=63 // pred_region
          %s1530 = sand.u32 %s32, 1
          %s1531 = scalar_lea.sflag [#allocation10], %s1530
          %s1532 = sand.u32 %s160, 1
          %s1533 = smul.addr %s1532, 1024
          %s1534 = scalar_lea.vmem [#allocation11], %s1533
          %1536 = dma.done %s1531, 16384
        $region76: #{tpu_custom_call.1} parent=63 // pred_fallthru
          _
        // Predicated region
        $region77: #{tpu_custom_call.1} parent=63 // pred_check
          %p1537 = pneg %p201
        $region78: #{tpu_custom_call.1} parent=63 // pred_check_branch
          %1539 = sbr.rel (%p1537) target = $region80
        $region79: #{tpu_custom_call.1} parent=63 // pred_region
          %s1540 = sand.u32 %s186, 1
          %s1541 = scalar_lea.sflag [#allocation13], %s1540
          %s1542 = sand.u32 %s186, 1
          %s1543 = smul.addr %s1542, 4096
          %s1544 = scalar_lea.vmem [#allocation12], %s1543
          %1546 = dma.done %s1541, 65536
        $region80: #{tpu_custom_call.1} parent=63 // pred_fallthru
          _
      $region64: #{tpu_custom_call.1} parent=5 // pred_fallthru
        _
    $region6: #{tpu_custom_call.1} parent=1 // loop_footer
      %s30 = sadd.s32 1, %s26
    $region7: #{tpu_custom_call.1} parent=1 // loop_footer_branch
      %25 = sbr.rel target = $region3
    $region8: #{tpu_custom_call.1} parent=1 // loop_exit
      _
    %1547 = vsyncpa [#allocation3], 1
    %s1548 = scalar_lea.sflag [#allocation3], 1
    %1549 = vsyncpa %s1548, 1
    %1550 = vsyncpa [#allocation6], 1
    %1551 = vsyncpa [#allocation4], 1
    %s1552 = scalar_lea.sflag [#allocation4], 1
    %1553 = vsyncpa %s1552, 1
    %1554 = vsyncpa [#allocation10], 1
    %s1555 = scalar_lea.sflag [#allocation10], 1
    %1556 = vsyncpa %s1555, 1
    %1557 = vsyncpa [#allocation13], 1
    %s1558 = scalar_lea.sflag [#allocation13], 1
    %1559 = vsyncpa %s1558, 1

</llo_original>
